<compile_context>
chip_gen: v5e
topology: v5e:2x2
jax: 0.10.0
libtpu: 0.0.40
codegen_flags: <defaults>
</compile_context>

<pallas_src>
import functools

import jax
import jax.numpy as jnp
from jax.experimental import pallas as pl
from jax.experimental.pallas import tpu as pltpu


LANES = 128                 # lane width of a vreg
MIN_TILE_ROWS = 8           # sublane granule
MAX_ROWS_CHUNK = 64         # rows per in-register chunk (64x128 f32 = 8 vregs)
MAX_CHUNKS_PER_BLOCK = 32   # up to 2048 rows (1 MiB f32) per grid step


def _round_up(a, b):
    return ((a + b - 1) // b) * b


def _cdiv(a, b):
    return (a + b - 1) // b


def _choose_tiling(total_rows):
    """Pick (rows_chunk, chunks_per_block).

    Guarantees >= 2 grid steps whenever the input spans more than one minimal
    (8,128) tile, so v7x's two TensorCores both get work; otherwise collapses
    to a single full-array block."""
    if total_rows <= MIN_TILE_ROWS:
        return total_rows, 1
    half_rows = _round_up(_cdiv(total_rows, 2), MIN_TILE_ROWS)
    target = min(MAX_CHUNKS_PER_BLOCK * MAX_ROWS_CHUNK, half_rows)
    if target < MAX_ROWS_CHUNK:
        return target, 1
    return MAX_ROWS_CHUNK, target // MAX_ROWS_CHUNK


def _fitting_gelu_kernel(x_ref, w1_ref, b1_ref, w2_ref, b2_ref, o_ref, *,
                         rows_chunk, compute_dtype):
    # x_ref / o_ref : (rows_block, 128) VMEM tiles (native dtype)
    # w1_ref / b1_ref / w2_ref : (H,) SMEM f32 ; b2_ref : (1,) SMEM f32
    hidden = w1_ref.shape[0]
    rows_block = x_ref.shape[0]
    n_chunks = rows_block // rows_chunk

    # Hoist every SMEM scalar read (and its cast) out of the chunk loop:
    # each parameter scalar is read exactly once per grid step.
    w1s = [w1_ref[h].astype(compute_dtype) for h in range(hidden)]
    b1s = [b1_ref[h].astype(compute_dtype) for h in range(hidden)]
    w2s = [w2_ref[h].astype(compute_dtype) for h in range(hidden)]
    b2 = b2_ref[0].astype(compute_dtype)

    def process_chunk(r0):
        x = x_ref[pl.ds(r0, rows_chunk), :].astype(compute_dtype)
        acc = jnp.zeros(x.shape, compute_dtype)
        for h in range(hidden):            # static unroll over the hidden dim
            acc = acc + w2s[h] * jnp.maximum(x * w1s[h] + b1s[h], 0.0)
        o_ref[pl.ds(r0, rows_chunk), :] = (acc + b2).astype(o_ref.dtype)

    if n_chunks <= 2:
        # Small block: keep everything statically unrolled.
        for c in range(n_chunks):
            process_chunk(c * rows_chunk)
    else:
        # Large block: roll the chunk loop so code size stays ~5*H vector ops
        # regardless of chunks_per_block; hidden loop remains fully unrolled.
        def body(c, carry):
            process_chunk(pl.multiple_of(c * rows_chunk, rows_chunk))
            return carry
        jax.lax.fori_loop(0, n_chunks, body, 0)


@jax.jit
def fitting_gelu(x, w1, b1, w2, b2):
    """x: any-shape array. Params follow PyTorch nn.Linear conventions:
       w1: (H, 1), b1: (H,), w2: (1, H), b2: (1,). Returns array of x.shape."""
    orig_shape = x.shape
    H = w1.shape[0]

    if jnp.issubdtype(x.dtype, jnp.floating):
        io_dtype = x.dtype
    else:
        # TODO(synk): PyTorch nn.Linear rejects integer inputs; we promote to
        # f32 and return f32 rather than silently truncating back to int.
        io_dtype = jnp.float32
        x = x.astype(jnp.float32)

    if x.size == 0:
        return x.reshape(orig_shape)

    # bf16 inputs take the packed-bf16 compute path (2x VALU rate on v6e/v7x).
    compute_dtype = jnp.bfloat16 if io_dtype == jnp.bfloat16 else jnp.float32

    n = x.size
    n_pad = _round_up(n, LANES)
    flat = x.reshape(-1)
    if n_pad != n:                       # only the ragged sub-128 tail is padded
        flat = jnp.pad(flat, (0, n_pad - n))
    total_rows = n_pad // LANES
    x2d = flat.reshape(total_rows, LANES)          # lane-dense slab, native dtype

    rows_chunk, chunks_per_block = _choose_tiling(total_rows)
    rows_block = rows_chunk * chunks_per_block
    grid = (_cdiv(total_rows, rows_block),)        # last block may be partial

    # Params as flat f32 arrays for SMEM residency (tiny; negligible cost).
    w1_k = w1.reshape(H).astype(jnp.float32)
    b1_k = b1.reshape(H).astype(jnp.float32)
    w2_k = w2.reshape(H).astype(jnp.float32)
    b2_k = b2.reshape(1).astype(jnp.float32)

    kernel = functools.partial(_fitting_gelu_kernel,
                               rows_chunk=rows_chunk,
                               compute_dtype=compute_dtype)

    out2d = pl.pallas_call(
        kernel,
        out_shape=jax.ShapeDtypeStruct((total_rows, LANES), io_dtype),
        grid_spec=pltpu.PrefetchScalarGridSpec(
            num_scalar_prefetch=0,
            grid=grid,
            in_specs=[
                pl.BlockSpec((rows_block, LANES), lambda i: (i, 0)),    # x tile
                pl.BlockSpec(memory_space=pltpu.MemorySpace.SMEM),      # w1
                pl.BlockSpec(memory_space=pltpu.MemorySpace.SMEM),      # b1
                pl.BlockSpec(memory_space=pltpu.MemorySpace.SMEM),      # w2
                pl.BlockSpec(memory_space=pltpu.MemorySpace.SMEM),      # b2
            ],
            out_specs=pl.BlockSpec((rows_block, LANES), lambda i: (i, 0)),
        ),
        compiler_params=pltpu.CompilerParams(
            dimension_semantics=("parallel",)),
    )(x2d, w1_k, b1_k, w2_k, b2_k)

    out = out2d.reshape(-1)
    if n_pad != n:
        out = out[:n]
    return out.reshape(orig_shape)


def _reference(x, w1, b1, w2, b2):
    # Pure-JAX reference matching the PyTorch forward exactly.
    xe = x[..., None]                                 # unsqueeze(-1) -> (..., 1)
    h = jnp.maximum(xe * w1[:, 0] + b1, 0.0)          # fc1 + relu -> (..., H)
    y = jnp.sum(h * w2[0], axis=-1) + b2[0]           # fc2 -> (...,)
    return y


if __name__ == "__main__":
    key = jax.random.PRNGKey(0)
    k_x, k_w1, k_b1, k_w2, k_b2, k_x2, k_x3, k_x4 = jax.random.split(key, 8)

    H = 64
    # Deterministic parameter init mirroring nn.Linear uniform(-1/sqrt(fan_in), +)
    w1 = jax.random.uniform(k_w1, (H, 1), jnp.float32, -1.0, 1.0)        # fan_in=1
    b1 = jax.random.uniform(k_b1, (H,), jnp.float32, -1.0, 1.0)
    bound2 = 1.0 / float(H) ** 0.5
    w2 = jax.random.uniform(k_w2, (1, H), jnp.float32, -bound2, bound2)  # fan_in=H
    b2 = jax.random.uniform(k_b2, (1,), jnp.float32, -bound2, bound2)

    # --- f32, small NCHW-like input (16 rows -> two 8-row grid blocks) ---
    x = jax.random.normal(k_x, (2, 4, 16, 16), dtype=jnp.float32)
    out = jax.block_until_ready(fitting_gelu(x, w1, b1, w2, b2))
    ref = _reference(x, w1, b1, w2, b2)
    assert out.shape == x.shape and out.dtype == x.dtype
    err = float(jnp.max(jnp.abs(out - ref)))
    assert jnp.allclose(out, ref, atol=1e-4, rtol=1e-4), err

    # --- f32, larger input: exercises rolled chunk loop + partial boundary block ---
    x2 = jax.random.normal(k_x2, (125, 512), dtype=jnp.float32)   # 500 rows
    out2 = jax.block_until_ready(fitting_gelu(x2, w1, b1, w2, b2))
    ref2 = _reference(x2, w1, b1, w2, b2)
    err2 = float(jnp.max(jnp.abs(out2 - ref2)))
    assert out2.shape == x2.shape
    assert jnp.allclose(out2, ref2, atol=1e-4, rtol=1e-4), err2

    # --- f32, ragged size: exercises the lane-tail pad/slice path ---
    x3 = jax.random.normal(k_x3, (3, 5, 7), dtype=jnp.float32)    # 105 elements
    out3 = jax.block_until_ready(fitting_gelu(x3, w1, b1, w2, b2))
    ref3 = _reference(x3, w1, b1, w2, b2)
    err3 = float(jnp.max(jnp.abs(out3 - ref3)))
    assert out3.shape == x3.shape
    assert jnp.allclose(out3, ref3, atol=1e-4, rtol=1e-4), err3

    # --- bf16 compute path (relaxed tolerance; 2x VALU rate on v6e/v7x) ---
    x4 = jax.random.normal(k_x4, (16, 256), jnp.float32).astype(jnp.bfloat16)
    out4 = jax.block_until_ready(fitting_gelu(x4, w1, b1, w2, b2))
    ref4 = _reference(x4.astype(jnp.float32), w1, b1, w2, b2)
    diff4 = jnp.abs(out4.astype(jnp.float32) - ref4)
    assert out4.shape == x4.shape and out4.dtype == jnp.bfloat16
    assert float(jnp.mean(diff4)) < 0.05 and float(jnp.max(diff4)) < 0.5, (
        float(jnp.mean(diff4)), float(jnp.max(diff4)))

    print("KERNEL_OK")
</pallas_src>

<mosaic_0001>
module attributes {stable_mosaic.version = 11 : i64} {
  func.func @_fitting_gelu_kernel(%arg0: i32, %arg1: memref<8x128xf32, #tpu.memory_space<vmem>>, %arg2: memref<64xf32, #tpu.memory_space<smem>>, %arg3: memref<64xf32, #tpu.memory_space<smem>>, %arg4: memref<64xf32, #tpu.memory_space<smem>>, %arg5: memref<1xf32, #tpu.memory_space<smem>>, %arg6: memref<8x128xf32, #tpu.memory_space<vmem>>) attributes {dimension_semantics = [#tpu.dimension_semantics<parallel>], iteration_bounds = array<i64: 2>, scalar_prefetch = 0 : i64, scratch_operands = 0 : i64, tpu.core_type = #tpu.core_type<tc>, window_params = [{transform_indices = @transform_0, window_bounds = array<i64: 8, 128>}, {transform_indices = @transform_1, window_bounds = array<i64: 64>}, {transform_indices = @transform_2, window_bounds = array<i64: 64>}, {transform_indices = @transform_3, window_bounds = array<i64: 64>}, {transform_indices = @transform_4, window_bounds = array<i64: 1>}, {transform_indices = @transform_5, window_bounds = array<i64: 8, 128>}]} {
    %c0 = arith.constant 0 : index
    %0 = memref.load %arg2[%c0] : memref<64xf32, #tpu.memory_space<smem>>
    %c1 = arith.constant 1 : index
    %1 = memref.load %arg2[%c1] : memref<64xf32, #tpu.memory_space<smem>>
    %c2 = arith.constant 2 : index
    %2 = memref.load %arg2[%c2] : memref<64xf32, #tpu.memory_space<smem>>
    %c3 = arith.constant 3 : index
    %3 = memref.load %arg2[%c3] : memref<64xf32, #tpu.memory_space<smem>>
    %c4 = arith.constant 4 : index
    %4 = memref.load %arg2[%c4] : memref<64xf32, #tpu.memory_space<smem>>
    %c5 = arith.constant 5 : index
    %5 = memref.load %arg2[%c5] : memref<64xf32, #tpu.memory_space<smem>>
    %c6 = arith.constant 6 : index
    %6 = memref.load %arg2[%c6] : memref<64xf32, #tpu.memory_space<smem>>
    %c7 = arith.constant 7 : index
    %7 = memref.load %arg2[%c7] : memref<64xf32, #tpu.memory_space<smem>>
    %c8 = arith.constant 8 : index
    %8 = memref.load %arg2[%c8] : memref<64xf32, #tpu.memory_space<smem>>
    %c9 = arith.constant 9 : index
    %9 = memref.load %arg2[%c9] : memref<64xf32, #tpu.memory_space<smem>>
    %c10 = arith.constant 10 : index
    %10 = memref.load %arg2[%c10] : memref<64xf32, #tpu.memory_space<smem>>
    %c11 = arith.constant 11 : index
    %11 = memref.load %arg2[%c11] : memref<64xf32, #tpu.memory_space<smem>>
    %c12 = arith.constant 12 : index
    %12 = memref.load %arg2[%c12] : memref<64xf32, #tpu.memory_space<smem>>
    %c13 = arith.constant 13 : index
    %13 = memref.load %arg2[%c13] : memref<64xf32, #tpu.memory_space<smem>>
    %c14 = arith.constant 14 : index
    %14 = memref.load %arg2[%c14] : memref<64xf32, #tpu.memory_space<smem>>
    %c15 = arith.constant 15 : index
    %15 = memref.load %arg2[%c15] : memref<64xf32, #tpu.memory_space<smem>>
    %c16 = arith.constant 16 : index
    %16 = memref.load %arg2[%c16] : memref<64xf32, #tpu.memory_space<smem>>
    %c17 = arith.constant 17 : index
    %17 = memref.load %arg2[%c17] : memref<64xf32, #tpu.memory_space<smem>>
    %c18 = arith.constant 18 : index
    %18 = memref.load %arg2[%c18] : memref<64xf32, #tpu.memory_space<smem>>
    %c19 = arith.constant 19 : index
    %19 = memref.load %arg2[%c19] : memref<64xf32, #tpu.memory_space<smem>>
    %c20 = arith.constant 20 : index
    %20 = memref.load %arg2[%c20] : memref<64xf32, #tpu.memory_space<smem>>
    %c21 = arith.constant 21 : index
    %21 = memref.load %arg2[%c21] : memref<64xf32, #tpu.memory_space<smem>>
    %c22 = arith.constant 22 : index
    %22 = memref.load %arg2[%c22] : memref<64xf32, #tpu.memory_space<smem>>
    %c23 = arith.constant 23 : index
    %23 = memref.load %arg2[%c23] : memref<64xf32, #tpu.memory_space<smem>>
    %c24 = arith.constant 24 : index
    %24 = memref.load %arg2[%c24] : memref<64xf32, #tpu.memory_space<smem>>
    %c25 = arith.constant 25 : index
    %25 = memref.load %arg2[%c25] : memref<64xf32, #tpu.memory_space<smem>>
    %c26 = arith.constant 26 : index
    %26 = memref.load %arg2[%c26] : memref<64xf32, #tpu.memory_space<smem>>
    %c27 = arith.constant 27 : index
    %27 = memref.load %arg2[%c27] : memref<64xf32, #tpu.memory_space<smem>>
    %c28 = arith.constant 28 : index
    %28 = memref.load %arg2[%c28] : memref<64xf32, #tpu.memory_space<smem>>
    %c29 = arith.constant 29 : index
    %29 = memref.load %arg2[%c29] : memref<64xf32, #tpu.memory_space<smem>>
    %c30 = arith.constant 30 : index
    %30 = memref.load %arg2[%c30] : memref<64xf32, #tpu.memory_space<smem>>
    %c31 = arith.constant 31 : index
    %31 = memref.load %arg2[%c31] : memref<64xf32, #tpu.memory_space<smem>>
    %c32 = arith.constant 32 : index
    %32 = memref.load %arg2[%c32] : memref<64xf32, #tpu.memory_space<smem>>
    %c33 = arith.constant 33 : index
    %33 = memref.load %arg2[%c33] : memref<64xf32, #tpu.memory_space<smem>>
    %c34 = arith.constant 34 : index
    %34 = memref.load %arg2[%c34] : memref<64xf32, #tpu.memory_space<smem>>
    %c35 = arith.constant 35 : index
    %35 = memref.load %arg2[%c35] : memref<64xf32, #tpu.memory_space<smem>>
    %c36 = arith.constant 36 : index
    %36 = memref.load %arg2[%c36] : memref<64xf32, #tpu.memory_space<smem>>
    %c37 = arith.constant 37 : index
    %37 = memref.load %arg2[%c37] : memref<64xf32, #tpu.memory_space<smem>>
    %c38 = arith.constant 38 : index
    %38 = memref.load %arg2[%c38] : memref<64xf32, #tpu.memory_space<smem>>
    %c39 = arith.constant 39 : index
    %39 = memref.load %arg2[%c39] : memref<64xf32, #tpu.memory_space<smem>>
    %c40 = arith.constant 40 : index
    %40 = memref.load %arg2[%c40] : memref<64xf32, #tpu.memory_space<smem>>
    %c41 = arith.constant 41 : index
    %41 = memref.load %arg2[%c41] : memref<64xf32, #tpu.memory_space<smem>>
    %c42 = arith.constant 42 : index
    %42 = memref.load %arg2[%c42] : memref<64xf32, #tpu.memory_space<smem>>
    %c43 = arith.constant 43 : index
    %43 = memref.load %arg2[%c43] : memref<64xf32, #tpu.memory_space<smem>>
    %c44 = arith.constant 44 : index
    %44 = memref.load %arg2[%c44] : memref<64xf32, #tpu.memory_space<smem>>
    %c45 = arith.constant 45 : index
    %45 = memref.load %arg2[%c45] : memref<64xf32, #tpu.memory_space<smem>>
    %c46 = arith.constant 46 : index
    %46 = memref.load %arg2[%c46] : memref<64xf32, #tpu.memory_space<smem>>
    %c47 = arith.constant 47 : index
    %47 = memref.load %arg2[%c47] : memref<64xf32, #tpu.memory_space<smem>>
    %c48 = arith.constant 48 : index
    %48 = memref.load %arg2[%c48] : memref<64xf32, #tpu.memory_space<smem>>
    %c49 = arith.constant 49 : index
    %49 = memref.load %arg2[%c49] : memref<64xf32, #tpu.memory_space<smem>>
    %c50 = arith.constant 50 : index
    %50 = memref.load %arg2[%c50] : memref<64xf32, #tpu.memory_space<smem>>
    %c51 = arith.constant 51 : index
    %51 = memref.load %arg2[%c51] : memref<64xf32, #tpu.memory_space<smem>>
    %c52 = arith.constant 52 : index
    %52 = memref.load %arg2[%c52] : memref<64xf32, #tpu.memory_space<smem>>
    %c53 = arith.constant 53 : index
    %53 = memref.load %arg2[%c53] : memref<64xf32, #tpu.memory_space<smem>>
    %c54 = arith.constant 54 : index
    %54 = memref.load %arg2[%c54] : memref<64xf32, #tpu.memory_space<smem>>
    %c55 = arith.constant 55 : index
    %55 = memref.load %arg2[%c55] : memref<64xf32, #tpu.memory_space<smem>>
    %c56 = arith.constant 56 : index
    %56 = memref.load %arg2[%c56] : memref<64xf32, #tpu.memory_space<smem>>
    %c57 = arith.constant 57 : index
    %57 = memref.load %arg2[%c57] : memref<64xf32, #tpu.memory_space<smem>>
    %c58 = arith.constant 58 : index
    %58 = memref.load %arg2[%c58] : memref<64xf32, #tpu.memory_space<smem>>
    %c59 = arith.constant 59 : index
    %59 = memref.load %arg2[%c59] : memref<64xf32, #tpu.memory_space<smem>>
    %c60 = arith.constant 60 : index
    %60 = memref.load %arg2[%c60] : memref<64xf32, #tpu.memory_space<smem>>
    %c61 = arith.constant 61 : index
    %61 = memref.load %arg2[%c61] : memref<64xf32, #tpu.memory_space<smem>>
    %c62 = arith.constant 62 : index
    %62 = memref.load %arg2[%c62] : memref<64xf32, #tpu.memory_space<smem>>
    %c63 = arith.constant 63 : index
    %63 = memref.load %arg2[%c63] : memref<64xf32, #tpu.memory_space<smem>>
    %c0_0 = arith.constant 0 : index
    %64 = memref.load %arg3[%c0_0] : memref<64xf32, #tpu.memory_space<smem>>
    %c1_1 = arith.constant 1 : index
    %65 = memref.load %arg3[%c1_1] : memref<64xf32, #tpu.memory_space<smem>>
    %c2_2 = arith.constant 2 : index
    %66 = memref.load %arg3[%c2_2] : memref<64xf32, #tpu.memory_space<smem>>
    %c3_3 = arith.constant 3 : index
    %67 = memref.load %arg3[%c3_3] : memref<64xf32, #tpu.memory_space<smem>>
    %c4_4 = arith.constant 4 : index
    %68 = memref.load %arg3[%c4_4] : memref<64xf32, #tpu.memory_space<smem>>
    %c5_5 = arith.constant 5 : index
    %69 = memref.load %arg3[%c5_5] : memref<64xf32, #tpu.memory_space<smem>>
    %c6_6 = arith.constant 6 : index
    %70 = memref.load %arg3[%c6_6] : memref<64xf32, #tpu.memory_space<smem>>
    %c7_7 = arith.constant 7 : index
    %71 = memref.load %arg3[%c7_7] : memref<64xf32, #tpu.memory_space<smem>>
    %c8_8 = arith.constant 8 : index
    %72 = memref.load %arg3[%c8_8] : memref<64xf32, #tpu.memory_space<smem>>
    %c9_9 = arith.constant 9 : index
    %73 = memref.load %arg3[%c9_9] : memref<64xf32, #tpu.memory_space<smem>>
    %c10_10 = arith.constant 10 : index
    %74 = memref.load %arg3[%c10_10] : memref<64xf32, #tpu.memory_space<smem>>
    %c11_11 = arith.constant 11 : index
    %75 = memref.load %arg3[%c11_11] : memref<64xf32, #tpu.memory_space<smem>>
    %c12_12 = arith.constant 12 : index
    %76 = memref.load %arg3[%c12_12] : memref<64xf32, #tpu.memory_space<smem>>
    %c13_13 = arith.constant 13 : index
    %77 = memref.load %arg3[%c13_13] : memref<64xf32, #tpu.memory_space<smem>>
    %c14_14 = arith.constant 14 : index
    %78 = memref.load %arg3[%c14_14] : memref<64xf32, #tpu.memory_space<smem>>
    %c15_15 = arith.constant 15 : index
    %79 = memref.load %arg3[%c15_15] : memref<64xf32, #tpu.memory_space<smem>>
    %c16_16 = arith.constant 16 : index
    %80 = memref.load %arg3[%c16_16] : memref<64xf32, #tpu.memory_space<smem>>
    %c17_17 = arith.constant 17 : index
    %81 = memref.load %arg3[%c17_17] : memref<64xf32, #tpu.memory_space<smem>>
    %c18_18 = arith.constant 18 : index
    %82 = memref.load %arg3[%c18_18] : memref<64xf32, #tpu.memory_space<smem>>
    %c19_19 = arith.constant 19 : index
    %83 = memref.load %arg3[%c19_19] : memref<64xf32, #tpu.memory_space<smem>>
    %c20_20 = arith.constant 20 : index
    %84 = memref.load %arg3[%c20_20] : memref<64xf32, #tpu.memory_space<smem>>
    %c21_21 = arith.constant 21 : index
    %85 = memref.load %arg3[%c21_21] : memref<64xf32, #tpu.memory_space<smem>>
    %c22_22 = arith.constant 22 : index
    %86 = memref.load %arg3[%c22_22] : memref<64xf32, #tpu.memory_space<smem>>
    %c23_23 = arith.constant 23 : index
    %87 = memref.load %arg3[%c23_23] : memref<64xf32, #tpu.memory_space<smem>>
    %c24_24 = arith.constant 24 : index
    %88 = memref.load %arg3[%c24_24] : memref<64xf32, #tpu.memory_space<smem>>
    %c25_25 = arith.constant 25 : index
    %89 = memref.load %arg3[%c25_25] : memref<64xf32, #tpu.memory_space<smem>>
    %c26_26 = arith.constant 26 : index
    %90 = memref.load %arg3[%c26_26] : memref<64xf32, #tpu.memory_space<smem>>
    %c27_27 = arith.constant 27 : index
    %91 = memref.load %arg3[%c27_27] : memref<64xf32, #tpu.memory_space<smem>>
    %c28_28 = arith.constant 28 : index
    %92 = memref.load %arg3[%c28_28] : memref<64xf32, #tpu.memory_space<smem>>
    %c29_29 = arith.constant 29 : index
    %93 = memref.load %arg3[%c29_29] : memref<64xf32, #tpu.memory_space<smem>>
    %c30_30 = arith.constant 30 : index
    %94 = memref.load %arg3[%c30_30] : memref<64xf32, #tpu.memory_space<smem>>
    %c31_31 = arith.constant 31 : index
    %95 = memref.load %arg3[%c31_31] : memref<64xf32, #tpu.memory_space<smem>>
    %c32_32 = arith.constant 32 : index
    %96 = memref.load %arg3[%c32_32] : memref<64xf32, #tpu.memory_space<smem>>
    %c33_33 = arith.constant 33 : index
    %97 = memref.load %arg3[%c33_33] : memref<64xf32, #tpu.memory_space<smem>>
    %c34_34 = arith.constant 34 : index
    %98 = memref.load %arg3[%c34_34] : memref<64xf32, #tpu.memory_space<smem>>
    %c35_35 = arith.constant 35 : index
    %99 = memref.load %arg3[%c35_35] : memref<64xf32, #tpu.memory_space<smem>>
    %c36_36 = arith.constant 36 : index
    %100 = memref.load %arg3[%c36_36] : memref<64xf32, #tpu.memory_space<smem>>
    %c37_37 = arith.constant 37 : index
    %101 = memref.load %arg3[%c37_37] : memref<64xf32, #tpu.memory_space<smem>>
    %c38_38 = arith.constant 38 : index
    %102 = memref.load %arg3[%c38_38] : memref<64xf32, #tpu.memory_space<smem>>
    %c39_39 = arith.constant 39 : index
    %103 = memref.load %arg3[%c39_39] : memref<64xf32, #tpu.memory_space<smem>>
    %c40_40 = arith.constant 40 : index
    %104 = memref.load %arg3[%c40_40] : memref<64xf32, #tpu.memory_space<smem>>
    %c41_41 = arith.constant 41 : index
    %105 = memref.load %arg3[%c41_41] : memref<64xf32, #tpu.memory_space<smem>>
    %c42_42 = arith.constant 42 : index
    %106 = memref.load %arg3[%c42_42] : memref<64xf32, #tpu.memory_space<smem>>
    %c43_43 = arith.constant 43 : index
    %107 = memref.load %arg3[%c43_43] : memref<64xf32, #tpu.memory_space<smem>>
    %c44_44 = arith.constant 44 : index
    %108 = memref.load %arg3[%c44_44] : memref<64xf32, #tpu.memory_space<smem>>
    %c45_45 = arith.constant 45 : index
    %109 = memref.load %arg3[%c45_45] : memref<64xf32, #tpu.memory_space<smem>>
    %c46_46 = arith.constant 46 : index
    %110 = memref.load %arg3[%c46_46] : memref<64xf32, #tpu.memory_space<smem>>
    %c47_47 = arith.constant 47 : index
    %111 = memref.load %arg3[%c47_47] : memref<64xf32, #tpu.memory_space<smem>>
    %c48_48 = arith.constant 48 : index
    %112 = memref.load %arg3[%c48_48] : memref<64xf32, #tpu.memory_space<smem>>
    %c49_49 = arith.constant 49 : index
    %113 = memref.load %arg3[%c49_49] : memref<64xf32, #tpu.memory_space<smem>>
    %c50_50 = arith.constant 50 : index
    %114 = memref.load %arg3[%c50_50] : memref<64xf32, #tpu.memory_space<smem>>
    %c51_51 = arith.constant 51 : index
    %115 = memref.load %arg3[%c51_51] : memref<64xf32, #tpu.memory_space<smem>>
    %c52_52 = arith.constant 52 : index
    %116 = memref.load %arg3[%c52_52] : memref<64xf32, #tpu.memory_space<smem>>
    %c53_53 = arith.constant 53 : index
    %117 = memref.load %arg3[%c53_53] : memref<64xf32, #tpu.memory_space<smem>>
    %c54_54 = arith.constant 54 : index
    %118 = memref.load %arg3[%c54_54] : memref<64xf32, #tpu.memory_space<smem>>
    %c55_55 = arith.constant 55 : index
    %119 = memref.load %arg3[%c55_55] : memref<64xf32, #tpu.memory_space<smem>>
    %c56_56 = arith.constant 56 : index
    %120 = memref.load %arg3[%c56_56] : memref<64xf32, #tpu.memory_space<smem>>
    %c57_57 = arith.constant 57 : index
    %121 = memref.load %arg3[%c57_57] : memref<64xf32, #tpu.memory_space<smem>>
    %c58_58 = arith.constant 58 : index
    %122 = memref.load %arg3[%c58_58] : memref<64xf32, #tpu.memory_space<smem>>
    %c59_59 = arith.constant 59 : index
    %123 = memref.load %arg3[%c59_59] : memref<64xf32, #tpu.memory_space<smem>>
    %c60_60 = arith.constant 60 : index
    %124 = memref.load %arg3[%c60_60] : memref<64xf32, #tpu.memory_space<smem>>
    %c61_61 = arith.constant 61 : index
    %125 = memref.load %arg3[%c61_61] : memref<64xf32, #tpu.memory_space<smem>>
    %c62_62 = arith.constant 62 : index
    %126 = memref.load %arg3[%c62_62] : memref<64xf32, #tpu.memory_space<smem>>
    %c63_63 = arith.constant 63 : index
    %127 = memref.load %arg3[%c63_63] : memref<64xf32, #tpu.memory_space<smem>>
    %c0_64 = arith.constant 0 : index
    %128 = memref.load %arg4[%c0_64] : memref<64xf32, #tpu.memory_space<smem>>
    %c1_65 = arith.constant 1 : index
    %129 = memref.load %arg4[%c1_65] : memref<64xf32, #tpu.memory_space<smem>>
    %c2_66 = arith.constant 2 : index
    %130 = memref.load %arg4[%c2_66] : memref<64xf32, #tpu.memory_space<smem>>
    %c3_67 = arith.constant 3 : index
    %131 = memref.load %arg4[%c3_67] : memref<64xf32, #tpu.memory_space<smem>>
    %c4_68 = arith.constant 4 : index
    %132 = memref.load %arg4[%c4_68] : memref<64xf32, #tpu.memory_space<smem>>
    %c5_69 = arith.constant 5 : index
    %133 = memref.load %arg4[%c5_69] : memref<64xf32, #tpu.memory_space<smem>>
    %c6_70 = arith.constant 6 : index
    %134 = memref.load %arg4[%c6_70] : memref<64xf32, #tpu.memory_space<smem>>
    %c7_71 = arith.constant 7 : index
    %135 = memref.load %arg4[%c7_71] : memref<64xf32, #tpu.memory_space<smem>>
    %c8_72 = arith.constant 8 : index
    %136 = memref.load %arg4[%c8_72] : memref<64xf32, #tpu.memory_space<smem>>
    %c9_73 = arith.constant 9 : index
    %137 = memref.load %arg4[%c9_73] : memref<64xf32, #tpu.memory_space<smem>>
    %c10_74 = arith.constant 10 : index
    %138 = memref.load %arg4[%c10_74] : memref<64xf32, #tpu.memory_space<smem>>
    %c11_75 = arith.constant 11 : index
    %139 = memref.load %arg4[%c11_75] : memref<64xf32, #tpu.memory_space<smem>>
    %c12_76 = arith.constant 12 : index
    %140 = memref.load %arg4[%c12_76] : memref<64xf32, #tpu.memory_space<smem>>
    %c13_77 = arith.constant 13 : index
    %141 = memref.load %arg4[%c13_77] : memref<64xf32, #tpu.memory_space<smem>>
    %c14_78 = arith.constant 14 : index
    %142 = memref.load %arg4[%c14_78] : memref<64xf32, #tpu.memory_space<smem>>
    %c15_79 = arith.constant 15 : index
    %143 = memref.load %arg4[%c15_79] : memref<64xf32, #tpu.memory_space<smem>>
    %c16_80 = arith.constant 16 : index
    %144 = memref.load %arg4[%c16_80] : memref<64xf32, #tpu.memory_space<smem>>
    %c17_81 = arith.constant 17 : index
    %145 = memref.load %arg4[%c17_81] : memref<64xf32, #tpu.memory_space<smem>>
    %c18_82 = arith.constant 18 : index
    %146 = memref.load %arg4[%c18_82] : memref<64xf32, #tpu.memory_space<smem>>
    %c19_83 = arith.constant 19 : index
    %147 = memref.load %arg4[%c19_83] : memref<64xf32, #tpu.memory_space<smem>>
    %c20_84 = arith.constant 20 : index
    %148 = memref.load %arg4[%c20_84] : memref<64xf32, #tpu.memory_space<smem>>
    %c21_85 = arith.constant 21 : index
    %149 = memref.load %arg4[%c21_85] : memref<64xf32, #tpu.memory_space<smem>>
    %c22_86 = arith.constant 22 : index
    %150 = memref.load %arg4[%c22_86] : memref<64xf32, #tpu.memory_space<smem>>
    %c23_87 = arith.constant 23 : index
    %151 = memref.load %arg4[%c23_87] : memref<64xf32, #tpu.memory_space<smem>>
    %c24_88 = arith.constant 24 : index
    %152 = memref.load %arg4[%c24_88] : memref<64xf32, #tpu.memory_space<smem>>
    %c25_89 = arith.constant 25 : index
    %153 = memref.load %arg4[%c25_89] : memref<64xf32, #tpu.memory_space<smem>>
    %c26_90 = arith.constant 26 : index
    %154 = memref.load %arg4[%c26_90] : memref<64xf32, #tpu.memory_space<smem>>
    %c27_91 = arith.constant 27 : index
    %155 = memref.load %arg4[%c27_91] : memref<64xf32, #tpu.memory_space<smem>>
    %c28_92 = arith.constant 28 : index
    %156 = memref.load %arg4[%c28_92] : memref<64xf32, #tpu.memory_space<smem>>
    %c29_93 = arith.constant 29 : index
    %157 = memref.load %arg4[%c29_93] : memref<64xf32, #tpu.memory_space<smem>>
    %c30_94 = arith.constant 30 : index
    %158 = memref.load %arg4[%c30_94] : memref<64xf32, #tpu.memory_space<smem>>
    %c31_95 = arith.constant 31 : index
    %159 = memref.load %arg4[%c31_95] : memref<64xf32, #tpu.memory_space<smem>>
    %c32_96 = arith.constant 32 : index
    %160 = memref.load %arg4[%c32_96] : memref<64xf32, #tpu.memory_space<smem>>
    %c33_97 = arith.constant 33 : index
    %161 = memref.load %arg4[%c33_97] : memref<64xf32, #tpu.memory_space<smem>>
    %c34_98 = arith.constant 34 : index
    %162 = memref.load %arg4[%c34_98] : memref<64xf32, #tpu.memory_space<smem>>
    %c35_99 = arith.constant 35 : index
    %163 = memref.load %arg4[%c35_99] : memref<64xf32, #tpu.memory_space<smem>>
    %c36_100 = arith.constant 36 : index
    %164 = memref.load %arg4[%c36_100] : memref<64xf32, #tpu.memory_space<smem>>
    %c37_101 = arith.constant 37 : index
    %165 = memref.load %arg4[%c37_101] : memref<64xf32, #tpu.memory_space<smem>>
    %c38_102 = arith.constant 38 : index
    %166 = memref.load %arg4[%c38_102] : memref<64xf32, #tpu.memory_space<smem>>
    %c39_103 = arith.constant 39 : index
    %167 = memref.load %arg4[%c39_103] : memref<64xf32, #tpu.memory_space<smem>>
    %c40_104 = arith.constant 40 : index
    %168 = memref.load %arg4[%c40_104] : memref<64xf32, #tpu.memory_space<smem>>
    %c41_105 = arith.constant 41 : index
    %169 = memref.load %arg4[%c41_105] : memref<64xf32, #tpu.memory_space<smem>>
    %c42_106 = arith.constant 42 : index
    %170 = memref.load %arg4[%c42_106] : memref<64xf32, #tpu.memory_space<smem>>
    %c43_107 = arith.constant 43 : index
    %171 = memref.load %arg4[%c43_107] : memref<64xf32, #tpu.memory_space<smem>>
    %c44_108 = arith.constant 44 : index
    %172 = memref.load %arg4[%c44_108] : memref<64xf32, #tpu.memory_space<smem>>
    %c45_109 = arith.constant 45 : index
    %173 = memref.load %arg4[%c45_109] : memref<64xf32, #tpu.memory_space<smem>>
    %c46_110 = arith.constant 46 : index
    %174 = memref.load %arg4[%c46_110] : memref<64xf32, #tpu.memory_space<smem>>
    %c47_111 = arith.constant 47 : index
    %175 = memref.load %arg4[%c47_111] : memref<64xf32, #tpu.memory_space<smem>>
    %c48_112 = arith.constant 48 : index
    %176 = memref.load %arg4[%c48_112] : memref<64xf32, #tpu.memory_space<smem>>
    %c49_113 = arith.constant 49 : index
    %177 = memref.load %arg4[%c49_113] : memref<64xf32, #tpu.memory_space<smem>>
    %c50_114 = arith.constant 50 : index
    %178 = memref.load %arg4[%c50_114] : memref<64xf32, #tpu.memory_space<smem>>
    %c51_115 = arith.constant 51 : index
    %179 = memref.load %arg4[%c51_115] : memref<64xf32, #tpu.memory_space<smem>>
    %c52_116 = arith.constant 52 : index
    %180 = memref.load %arg4[%c52_116] : memref<64xf32, #tpu.memory_space<smem>>
    %c53_117 = arith.constant 53 : index
    %181 = memref.load %arg4[%c53_117] : memref<64xf32, #tpu.memory_space<smem>>
    %c54_118 = arith.constant 54 : index
    %182 = memref.load %arg4[%c54_118] : memref<64xf32, #tpu.memory_space<smem>>
    %c55_119 = arith.constant 55 : index
    %183 = memref.load %arg4[%c55_119] : memref<64xf32, #tpu.memory_space<smem>>
    %c56_120 = arith.constant 56 : index
    %184 = memref.load %arg4[%c56_120] : memref<64xf32, #tpu.memory_space<smem>>
    %c57_121 = arith.constant 57 : index
    %185 = memref.load %arg4[%c57_121] : memref<64xf32, #tpu.memory_space<smem>>
    %c58_122 = arith.constant 58 : index
    %186 = memref.load %arg4[%c58_122] : memref<64xf32, #tpu.memory_space<smem>>
    %c59_123 = arith.constant 59 : index
    %187 = memref.load %arg4[%c59_123] : memref<64xf32, #tpu.memory_space<smem>>
    %c60_124 = arith.constant 60 : index
    %188 = memref.load %arg4[%c60_124] : memref<64xf32, #tpu.memory_space<smem>>
    %c61_125 = arith.constant 61 : index
    %189 = memref.load %arg4[%c61_125] : memref<64xf32, #tpu.memory_space<smem>>
    %c62_126 = arith.constant 62 : index
    %190 = memref.load %arg4[%c62_126] : memref<64xf32, #tpu.memory_space<smem>>
    %c63_127 = arith.constant 63 : index
    %191 = memref.load %arg4[%c63_127] : memref<64xf32, #tpu.memory_space<smem>>
    %c0_128 = arith.constant 0 : index
    %192 = memref.load %arg5[%c0_128] : memref<1xf32, #tpu.memory_space<smem>>
    %c0_129 = arith.constant 0 : index
    %c0_130 = arith.constant 0 : index
    %193 = vector.load %arg1[%c0_129, %c0_130] : memref<8x128xf32, #tpu.memory_space<vmem>>, vector<8x128xf32>
    %cst = arith.constant 0.000000e+00 : f32
    %194 = vector.broadcast %cst : f32 to vector<8x128xf32>
    %195 = vector.broadcast %0 : f32 to vector<8x128xf32>
    %196 = arith.mulf %193, %195 : vector<8x128xf32>
    %197 = vector.broadcast %64 : f32 to vector<8x128xf32>
    %198 = arith.addf %196, %197 : vector<8x128xf32>
    %cst_131 = arith.constant 0.000000e+00 : f32
    %199 = vector.broadcast %cst_131 : f32 to vector<8x128xf32>
    %200 = arith.maximumf %198, %199 : vector<8x128xf32>
    %201 = vector.broadcast %128 : f32 to vector<8x128xf32>
    %202 = arith.mulf %201, %200 : vector<8x128xf32>
    %203 = arith.addf %194, %202 : vector<8x128xf32>
    %204 = vector.broadcast %1 : f32 to vector<8x128xf32>
    %205 = arith.mulf %193, %204 : vector<8x128xf32>
    %206 = vector.broadcast %65 : f32 to vector<8x128xf32>
    %207 = arith.addf %205, %206 : vector<8x128xf32>
    %cst_132 = arith.constant 0.000000e+00 : f32
    %208 = vector.broadcast %cst_132 : f32 to vector<8x128xf32>
    %209 = arith.maximumf %207, %208 : vector<8x128xf32>
    %210 = vector.broadcast %129 : f32 to vector<8x128xf32>
    %211 = arith.mulf %210, %209 : vector<8x128xf32>
    %212 = arith.addf %203, %211 : vector<8x128xf32>
    %213 = vector.broadcast %2 : f32 to vector<8x128xf32>
    %214 = arith.mulf %193, %213 : vector<8x128xf32>
    %215 = vector.broadcast %66 : f32 to vector<8x128xf32>
    %216 = arith.addf %214, %215 : vector<8x128xf32>
    %cst_133 = arith.constant 0.000000e+00 : f32
    %217 = vector.broadcast %cst_133 : f32 to vector<8x128xf32>
    %218 = arith.maximumf %216, %217 : vector<8x128xf32>
    %219 = vector.broadcast %130 : f32 to vector<8x128xf32>
    %220 = arith.mulf %219, %218 : vector<8x128xf32>
    %221 = arith.addf %212, %220 : vector<8x128xf32>
    %222 = vector.broadcast %3 : f32 to vector<8x128xf32>
    %223 = arith.mulf %193, %222 : vector<8x128xf32>
    %224 = vector.broadcast %67 : f32 to vector<8x128xf32>
    %225 = arith.addf %223, %224 : vector<8x128xf32>
    %cst_134 = arith.constant 0.000000e+00 : f32
    %226 = vector.broadcast %cst_134 : f32 to vector<8x128xf32>
    %227 = arith.maximumf %225, %226 : vector<8x128xf32>
    %228 = vector.broadcast %131 : f32 to vector<8x128xf32>
    %229 = arith.mulf %228, %227 : vector<8x128xf32>
    %230 = arith.addf %221, %229 : vector<8x128xf32>
    %231 = vector.broadcast %4 : f32 to vector<8x128xf32>
    %232 = arith.mulf %193, %231 : vector<8x128xf32>
    %233 = vector.broadcast %68 : f32 to vector<8x128xf32>
    %234 = arith.addf %232, %233 : vector<8x128xf32>
    %cst_135 = arith.constant 0.000000e+00 : f32
    %235 = vector.broadcast %cst_135 : f32 to vector<8x128xf32>
    %236 = arith.maximumf %234, %235 : vector<8x128xf32>
    %237 = vector.broadcast %132 : f32 to vector<8x128xf32>
    %238 = arith.mulf %237, %236 : vector<8x128xf32>
    %239 = arith.addf %230, %238 : vector<8x128xf32>
    %240 = vector.broadcast %5 : f32 to vector<8x128xf32>
    %241 = arith.mulf %193, %240 : vector<8x128xf32>
    %242 = vector.broadcast %69 : f32 to vector<8x128xf32>
    %243 = arith.addf %241, %242 : vector<8x128xf32>
    %cst_136 = arith.constant 0.000000e+00 : f32
    %244 = vector.broadcast %cst_136 : f32 to vector<8x128xf32>
    %245 = arith.maximumf %243, %244 : vector<8x128xf32>
    %246 = vector.broadcast %133 : f32 to vector<8x128xf32>
    %247 = arith.mulf %246, %245 : vector<8x128xf32>
    %248 = arith.addf %239, %247 : vector<8x128xf32>
    %249 = vector.broadcast %6 : f32 to vector<8x128xf32>
    %250 = arith.mulf %193, %249 : vector<8x128xf32>
    %251 = vector.broadcast %70 : f32 to vector<8x128xf32>
    %252 = arith.addf %250, %251 : vector<8x128xf32>
    %cst_137 = arith.constant 0.000000e+00 : f32
    %253 = vector.broadcast %cst_137 : f32 to vector<8x128xf32>
    %254 = arith.maximumf %252, %253 : vector<8x128xf32>
    %255 = vector.broadcast %134 : f32 to vector<8x128xf32>
    %256 = arith.mulf %255, %254 : vector<8x128xf32>
    %257 = arith.addf %248, %256 : vector<8x128xf32>
    %258 = vector.broadcast %7 : f32 to vector<8x128xf32>
    %259 = arith.mulf %193, %258 : vector<8x128xf32>
    %260 = vector.broadcast %71 : f32 to vector<8x128xf32>
    %261 = arith.addf %259, %260 : vector<8x128xf32>
    %cst_138 = arith.constant 0.000000e+00 : f32
    %262 = vector.broadcast %cst_138 : f32 to vector<8x128xf32>
    %263 = arith.maximumf %261, %262 : vector<8x128xf32>
    %264 = vector.broadcast %135 : f32 to vector<8x128xf32>
    %265 = arith.mulf %264, %263 : vector<8x128xf32>
    %266 = arith.addf %257, %265 : vector<8x128xf32>
    %267 = vector.broadcast %8 : f32 to vector<8x128xf32>
    %268 = arith.mulf %193, %267 : vector<8x128xf32>
    %269 = vector.broadcast %72 : f32 to vector<8x128xf32>
    %270 = arith.addf %268, %269 : vector<8x128xf32>
    %cst_139 = arith.constant 0.000000e+00 : f32
    %271 = vector.broadcast %cst_139 : f32 to vector<8x128xf32>
    %272 = arith.maximumf %270, %271 : vector<8x128xf32>
    %273 = vector.broadcast %136 : f32 to vector<8x128xf32>
    %274 = arith.mulf %273, %272 : vector<8x128xf32>
    %275 = arith.addf %266, %274 : vector<8x128xf32>
    %276 = vector.broadcast %9 : f32 to vector<8x128xf32>
    %277 = arith.mulf %193, %276 : vector<8x128xf32>
    %278 = vector.broadcast %73 : f32 to vector<8x128xf32>
    %279 = arith.addf %277, %278 : vector<8x128xf32>
    %cst_140 = arith.constant 0.000000e+00 : f32
    %280 = vector.broadcast %cst_140 : f32 to vector<8x128xf32>
    %281 = arith.maximumf %279, %280 : vector<8x128xf32>
    %282 = vector.broadcast %137 : f32 to vector<8x128xf32>
    %283 = arith.mulf %282, %281 : vector<8x128xf32>
    %284 = arith.addf %275, %283 : vector<8x128xf32>
    %285 = vector.broadcast %10 : f32 to vector<8x128xf32>
    %286 = arith.mulf %193, %285 : vector<8x128xf32>
    %287 = vector.broadcast %74 : f32 to vector<8x128xf32>
    %288 = arith.addf %286, %287 : vector<8x128xf32>
    %cst_141 = arith.constant 0.000000e+00 : f32
    %289 = vector.broadcast %cst_141 : f32 to vector<8x128xf32>
    %290 = arith.maximumf %288, %289 : vector<8x128xf32>
    %291 = vector.broadcast %138 : f32 to vector<8x128xf32>
    %292 = arith.mulf %291, %290 : vector<8x128xf32>
    %293 = arith.addf %284, %292 : vector<8x128xf32>
    %294 = vector.broadcast %11 : f32 to vector<8x128xf32>
    %295 = arith.mulf %193, %294 : vector<8x128xf32>
    %296 = vector.broadcast %75 : f32 to vector<8x128xf32>
    %297 = arith.addf %295, %296 : vector<8x128xf32>
    %cst_142 = arith.constant 0.000000e+00 : f32
    %298 = vector.broadcast %cst_142 : f32 to vector<8x128xf32>
    %299 = arith.maximumf %297, %298 : vector<8x128xf32>
    %300 = vector.broadcast %139 : f32 to vector<8x128xf32>
    %301 = arith.mulf %300, %299 : vector<8x128xf32>
    %302 = arith.addf %293, %301 : vector<8x128xf32>
    %303 = vector.broadcast %12 : f32 to vector<8x128xf32>
    %304 = arith.mulf %193, %303 : vector<8x128xf32>
    %305 = vector.broadcast %76 : f32 to vector<8x128xf32>
    %306 = arith.addf %304, %305 : vector<8x128xf32>
    %cst_143 = arith.constant 0.000000e+00 : f32
    %307 = vector.broadcast %cst_143 : f32 to vector<8x128xf32>
    %308 = arith.maximumf %306, %307 : vector<8x128xf32>
    %309 = vector.broadcast %140 : f32 to vector<8x128xf32>
    %310 = arith.mulf %309, %308 : vector<8x128xf32>
    %311 = arith.addf %302, %310 : vector<8x128xf32>
    %312 = vector.broadcast %13 : f32 to vector<8x128xf32>
    %313 = arith.mulf %193, %312 : vector<8x128xf32>
    %314 = vector.broadcast %77 : f32 to vector<8x128xf32>
    %315 = arith.addf %313, %314 : vector<8x128xf32>
    %cst_144 = arith.constant 0.000000e+00 : f32
    %316 = vector.broadcast %cst_144 : f32 to vector<8x128xf32>
    %317 = arith.maximumf %315, %316 : vector<8x128xf32>
    %318 = vector.broadcast %141 : f32 to vector<8x128xf32>
    %319 = arith.mulf %318, %317 : vector<8x128xf32>
    %320 = arith.addf %311, %319 : vector<8x128xf32>
    %321 = vector.broadcast %14 : f32 to vector<8x128xf32>
    %322 = arith.mulf %193, %321 : vector<8x128xf32>
    %323 = vector.broadcast %78 : f32 to vector<8x128xf32>
    %324 = arith.addf %322, %323 : vector<8x128xf32>
    %cst_145 = arith.constant 0.000000e+00 : f32
    %325 = vector.broadcast %cst_145 : f32 to vector<8x128xf32>
    %326 = arith.maximumf %324, %325 : vector<8x128xf32>
    %327 = vector.broadcast %142 : f32 to vector<8x128xf32>
    %328 = arith.mulf %327, %326 : vector<8x128xf32>
    %329 = arith.addf %320, %328 : vector<8x128xf32>
    %330 = vector.broadcast %15 : f32 to vector<8x128xf32>
    %331 = arith.mulf %193, %330 : vector<8x128xf32>
    %332 = vector.broadcast %79 : f32 to vector<8x128xf32>
    %333 = arith.addf %331, %332 : vector<8x128xf32>
    %cst_146 = arith.constant 0.000000e+00 : f32
    %334 = vector.broadcast %cst_146 : f32 to vector<8x128xf32>
    %335 = arith.maximumf %333, %334 : vector<8x128xf32>
    %336 = vector.broadcast %143 : f32 to vector<8x128xf32>
    %337 = arith.mulf %336, %335 : vector<8x128xf32>
    %338 = arith.addf %329, %337 : vector<8x128xf32>
    %339 = vector.broadcast %16 : f32 to vector<8x128xf32>
    %340 = arith.mulf %193, %339 : vector<8x128xf32>
    %341 = vector.broadcast %80 : f32 to vector<8x128xf32>
    %342 = arith.addf %340, %341 : vector<8x128xf32>
    %cst_147 = arith.constant 0.000000e+00 : f32
    %343 = vector.broadcast %cst_147 : f32 to vector<8x128xf32>
    %344 = arith.maximumf %342, %343 : vector<8x128xf32>
    %345 = vector.broadcast %144 : f32 to vector<8x128xf32>
    %346 = arith.mulf %345, %344 : vector<8x128xf32>
    %347 = arith.addf %338, %346 : vector<8x128xf32>
    %348 = vector.broadcast %17 : f32 to vector<8x128xf32>
    %349 = arith.mulf %193, %348 : vector<8x128xf32>
    %350 = vector.broadcast %81 : f32 to vector<8x128xf32>
    %351 = arith.addf %349, %350 : vector<8x128xf32>
    %cst_148 = arith.constant 0.000000e+00 : f32
    %352 = vector.broadcast %cst_148 : f32 to vector<8x128xf32>
    %353 = arith.maximumf %351, %352 : vector<8x128xf32>
    %354 = vector.broadcast %145 : f32 to vector<8x128xf32>
    %355 = arith.mulf %354, %353 : vector<8x128xf32>
    %356 = arith.addf %347, %355 : vector<8x128xf32>
    %357 = vector.broadcast %18 : f32 to vector<8x128xf32>
    %358 = arith.mulf %193, %357 : vector<8x128xf32>
    %359 = vector.broadcast %82 : f32 to vector<8x128xf32>
    %360 = arith.addf %358, %359 : vector<8x128xf32>
    %cst_149 = arith.constant 0.000000e+00 : f32
    %361 = vector.broadcast %cst_149 : f32 to vector<8x128xf32>
    %362 = arith.maximumf %360, %361 : vector<8x128xf32>
    %363 = vector.broadcast %146 : f32 to vector<8x128xf32>
    %364 = arith.mulf %363, %362 : vector<8x128xf32>
    %365 = arith.addf %356, %364 : vector<8x128xf32>
    %366 = vector.broadcast %19 : f32 to vector<8x128xf32>
    %367 = arith.mulf %193, %366 : vector<8x128xf32>
    %368 = vector.broadcast %83 : f32 to vector<8x128xf32>
    %369 = arith.addf %367, %368 : vector<8x128xf32>
    %cst_150 = arith.constant 0.000000e+00 : f32
    %370 = vector.broadcast %cst_150 : f32 to vector<8x128xf32>
    %371 = arith.maximumf %369, %370 : vector<8x128xf32>
    %372 = vector.broadcast %147 : f32 to vector<8x128xf32>
    %373 = arith.mulf %372, %371 : vector<8x128xf32>
    %374 = arith.addf %365, %373 : vector<8x128xf32>
    %375 = vector.broadcast %20 : f32 to vector<8x128xf32>
    %376 = arith.mulf %193, %375 : vector<8x128xf32>
    %377 = vector.broadcast %84 : f32 to vector<8x128xf32>
    %378 = arith.addf %376, %377 : vector<8x128xf32>
    %cst_151 = arith.constant 0.000000e+00 : f32
    %379 = vector.broadcast %cst_151 : f32 to vector<8x128xf32>
    %380 = arith.maximumf %378, %379 : vector<8x128xf32>
    %381 = vector.broadcast %148 : f32 to vector<8x128xf32>
    %382 = arith.mulf %381, %380 : vector<8x128xf32>
    %383 = arith.addf %374, %382 : vector<8x128xf32>
    %384 = vector.broadcast %21 : f32 to vector<8x128xf32>
    %385 = arith.mulf %193, %384 : vector<8x128xf32>
    %386 = vector.broadcast %85 : f32 to vector<8x128xf32>
    %387 = arith.addf %385, %386 : vector<8x128xf32>
    %cst_152 = arith.constant 0.000000e+00 : f32
    %388 = vector.broadcast %cst_152 : f32 to vector<8x128xf32>
    %389 = arith.maximumf %387, %388 : vector<8x128xf32>
    %390 = vector.broadcast %149 : f32 to vector<8x128xf32>
    %391 = arith.mulf %390, %389 : vector<8x128xf32>
    %392 = arith.addf %383, %391 : vector<8x128xf32>
    %393 = vector.broadcast %22 : f32 to vector<8x128xf32>
    %394 = arith.mulf %193, %393 : vector<8x128xf32>
    %395 = vector.broadcast %86 : f32 to vector<8x128xf32>
    %396 = arith.addf %394, %395 : vector<8x128xf32>
    %cst_153 = arith.constant 0.000000e+00 : f32
    %397 = vector.broadcast %cst_153 : f32 to vector<8x128xf32>
    %398 = arith.maximumf %396, %397 : vector<8x128xf32>
    %399 = vector.broadcast %150 : f32 to vector<8x128xf32>
    %400 = arith.mulf %399, %398 : vector<8x128xf32>
    %401 = arith.addf %392, %400 : vector<8x128xf32>
    %402 = vector.broadcast %23 : f32 to vector<8x128xf32>
    %403 = arith.mulf %193, %402 : vector<8x128xf32>
    %404 = vector.broadcast %87 : f32 to vector<8x128xf32>
    %405 = arith.addf %403, %404 : vector<8x128xf32>
    %cst_154 = arith.constant 0.000000e+00 : f32
    %406 = vector.broadcast %cst_154 : f32 to vector<8x128xf32>
    %407 = arith.maximumf %405, %406 : vector<8x128xf32>
    %408 = vector.broadcast %151 : f32 to vector<8x128xf32>
    %409 = arith.mulf %408, %407 : vector<8x128xf32>
    %410 = arith.addf %401, %409 : vector<8x128xf32>
    %411 = vector.broadcast %24 : f32 to vector<8x128xf32>
    %412 = arith.mulf %193, %411 : vector<8x128xf32>
    %413 = vector.broadcast %88 : f32 to vector<8x128xf32>
    %414 = arith.addf %412, %413 : vector<8x128xf32>
    %cst_155 = arith.constant 0.000000e+00 : f32
    %415 = vector.broadcast %cst_155 : f32 to vector<8x128xf32>
    %416 = arith.maximumf %414, %415 : vector<8x128xf32>
    %417 = vector.broadcast %152 : f32 to vector<8x128xf32>
    %418 = arith.mulf %417, %416 : vector<8x128xf32>
    %419 = arith.addf %410, %418 : vector<8x128xf32>
    %420 = vector.broadcast %25 : f32 to vector<8x128xf32>
    %421 = arith.mulf %193, %420 : vector<8x128xf32>
    %422 = vector.broadcast %89 : f32 to vector<8x128xf32>
    %423 = arith.addf %421, %422 : vector<8x128xf32>
    %cst_156 = arith.constant 0.000000e+00 : f32
    %424 = vector.broadcast %cst_156 : f32 to vector<8x128xf32>
    %425 = arith.maximumf %423, %424 : vector<8x128xf32>
    %426 = vector.broadcast %153 : f32 to vector<8x128xf32>
    %427 = arith.mulf %426, %425 : vector<8x128xf32>
    %428 = arith.addf %419, %427 : vector<8x128xf32>
    %429 = vector.broadcast %26 : f32 to vector<8x128xf32>
    %430 = arith.mulf %193, %429 : vector<8x128xf32>
    %431 = vector.broadcast %90 : f32 to vector<8x128xf32>
    %432 = arith.addf %430, %431 : vector<8x128xf32>
    %cst_157 = arith.constant 0.000000e+00 : f32
    %433 = vector.broadcast %cst_157 : f32 to vector<8x128xf32>
    %434 = arith.maximumf %432, %433 : vector<8x128xf32>
    %435 = vector.broadcast %154 : f32 to vector<8x128xf32>
    %436 = arith.mulf %435, %434 : vector<8x128xf32>
    %437 = arith.addf %428, %436 : vector<8x128xf32>
    %438 = vector.broadcast %27 : f32 to vector<8x128xf32>
    %439 = arith.mulf %193, %438 : vector<8x128xf32>
    %440 = vector.broadcast %91 : f32 to vector<8x128xf32>
    %441 = arith.addf %439, %440 : vector<8x128xf32>
    %cst_158 = arith.constant 0.000000e+00 : f32
    %442 = vector.broadcast %cst_158 : f32 to vector<8x128xf32>
    %443 = arith.maximumf %441, %442 : vector<8x128xf32>
    %444 = vector.broadcast %155 : f32 to vector<8x128xf32>
    %445 = arith.mulf %444, %443 : vector<8x128xf32>
    %446 = arith.addf %437, %445 : vector<8x128xf32>
    %447 = vector.broadcast %28 : f32 to vector<8x128xf32>
    %448 = arith.mulf %193, %447 : vector<8x128xf32>
    %449 = vector.broadcast %92 : f32 to vector<8x128xf32>
    %450 = arith.addf %448, %449 : vector<8x128xf32>
    %cst_159 = arith.constant 0.000000e+00 : f32
    %451 = vector.broadcast %cst_159 : f32 to vector<8x128xf32>
    %452 = arith.maximumf %450, %451 : vector<8x128xf32>
    %453 = vector.broadcast %156 : f32 to vector<8x128xf32>
    %454 = arith.mulf %453, %452 : vector<8x128xf32>
    %455 = arith.addf %446, %454 : vector<8x128xf32>
    %456 = vector.broadcast %29 : f32 to vector<8x128xf32>
    %457 = arith.mulf %193, %456 : vector<8x128xf32>
    %458 = vector.broadcast %93 : f32 to vector<8x128xf32>
    %459 = arith.addf %457, %458 : vector<8x128xf32>
    %cst_160 = arith.constant 0.000000e+00 : f32
    %460 = vector.broadcast %cst_160 : f32 to vector<8x128xf32>
    %461 = arith.maximumf %459, %460 : vector<8x128xf32>
    %462 = vector.broadcast %157 : f32 to vector<8x128xf32>
    %463 = arith.mulf %462, %461 : vector<8x128xf32>
    %464 = arith.addf %455, %463 : vector<8x128xf32>
    %465 = vector.broadcast %30 : f32 to vector<8x128xf32>
    %466 = arith.mulf %193, %465 : vector<8x128xf32>
    %467 = vector.broadcast %94 : f32 to vector<8x128xf32>
    %468 = arith.addf %466, %467 : vector<8x128xf32>
    %cst_161 = arith.constant 0.000000e+00 : f32
    %469 = vector.broadcast %cst_161 : f32 to vector<8x128xf32>
    %470 = arith.maximumf %468, %469 : vector<8x128xf32>
    %471 = vector.broadcast %158 : f32 to vector<8x128xf32>
    %472 = arith.mulf %471, %470 : vector<8x128xf32>
    %473 = arith.addf %464, %472 : vector<8x128xf32>
    %474 = vector.broadcast %31 : f32 to vector<8x128xf32>
    %475 = arith.mulf %193, %474 : vector<8x128xf32>
    %476 = vector.broadcast %95 : f32 to vector<8x128xf32>
    %477 = arith.addf %475, %476 : vector<8x128xf32>
    %cst_162 = arith.constant 0.000000e+00 : f32
    %478 = vector.broadcast %cst_162 : f32 to vector<8x128xf32>
    %479 = arith.maximumf %477, %478 : vector<8x128xf32>
    %480 = vector.broadcast %159 : f32 to vector<8x128xf32>
    %481 = arith.mulf %480, %479 : vector<8x128xf32>
    %482 = arith.addf %473, %481 : vector<8x128xf32>
    %483 = vector.broadcast %32 : f32 to vector<8x128xf32>
    %484 = arith.mulf %193, %483 : vector<8x128xf32>
    %485 = vector.broadcast %96 : f32 to vector<8x128xf32>
    %486 = arith.addf %484, %485 : vector<8x128xf32>
    %cst_163 = arith.constant 0.000000e+00 : f32
    %487 = vector.broadcast %cst_163 : f32 to vector<8x128xf32>
    %488 = arith.maximumf %486, %487 : vector<8x128xf32>
    %489 = vector.broadcast %160 : f32 to vector<8x128xf32>
    %490 = arith.mulf %489, %488 : vector<8x128xf32>
    %491 = arith.addf %482, %490 : vector<8x128xf32>
    %492 = vector.broadcast %33 : f32 to vector<8x128xf32>
    %493 = arith.mulf %193, %492 : vector<8x128xf32>
    %494 = vector.broadcast %97 : f32 to vector<8x128xf32>
    %495 = arith.addf %493, %494 : vector<8x128xf32>
    %cst_164 = arith.constant 0.000000e+00 : f32
    %496 = vector.broadcast %cst_164 : f32 to vector<8x128xf32>
    %497 = arith.maximumf %495, %496 : vector<8x128xf32>
    %498 = vector.broadcast %161 : f32 to vector<8x128xf32>
    %499 = arith.mulf %498, %497 : vector<8x128xf32>
    %500 = arith.addf %491, %499 : vector<8x128xf32>
    %501 = vector.broadcast %34 : f32 to vector<8x128xf32>
    %502 = arith.mulf %193, %501 : vector<8x128xf32>
    %503 = vector.broadcast %98 : f32 to vector<8x128xf32>
    %504 = arith.addf %502, %503 : vector<8x128xf32>
    %cst_165 = arith.constant 0.000000e+00 : f32
    %505 = vector.broadcast %cst_165 : f32 to vector<8x128xf32>
    %506 = arith.maximumf %504, %505 : vector<8x128xf32>
    %507 = vector.broadcast %162 : f32 to vector<8x128xf32>
    %508 = arith.mulf %507, %506 : vector<8x128xf32>
    %509 = arith.addf %500, %508 : vector<8x128xf32>
    %510 = vector.broadcast %35 : f32 to vector<8x128xf32>
    %511 = arith.mulf %193, %510 : vector<8x128xf32>
    %512 = vector.broadcast %99 : f32 to vector<8x128xf32>
    %513 = arith.addf %511, %512 : vector<8x128xf32>
    %cst_166 = arith.constant 0.000000e+00 : f32
    %514 = vector.broadcast %cst_166 : f32 to vector<8x128xf32>
    %515 = arith.maximumf %513, %514 : vector<8x128xf32>
    %516 = vector.broadcast %163 : f32 to vector<8x128xf32>
    %517 = arith.mulf %516, %515 : vector<8x128xf32>
    %518 = arith.addf %509, %517 : vector<8x128xf32>
    %519 = vector.broadcast %36 : f32 to vector<8x128xf32>
    %520 = arith.mulf %193, %519 : vector<8x128xf32>
    %521 = vector.broadcast %100 : f32 to vector<8x128xf32>
    %522 = arith.addf %520, %521 : vector<8x128xf32>
    %cst_167 = arith.constant 0.000000e+00 : f32
    %523 = vector.broadcast %cst_167 : f32 to vector<8x128xf32>
    %524 = arith.maximumf %522, %523 : vector<8x128xf32>
    %525 = vector.broadcast %164 : f32 to vector<8x128xf32>
    %526 = arith.mulf %525, %524 : vector<8x128xf32>
    %527 = arith.addf %518, %526 : vector<8x128xf32>
    %528 = vector.broadcast %37 : f32 to vector<8x128xf32>
    %529 = arith.mulf %193, %528 : vector<8x128xf32>
    %530 = vector.broadcast %101 : f32 to vector<8x128xf32>
    %531 = arith.addf %529, %530 : vector<8x128xf32>
    %cst_168 = arith.constant 0.000000e+00 : f32
    %532 = vector.broadcast %cst_168 : f32 to vector<8x128xf32>
    %533 = arith.maximumf %531, %532 : vector<8x128xf32>
    %534 = vector.broadcast %165 : f32 to vector<8x128xf32>
    %535 = arith.mulf %534, %533 : vector<8x128xf32>
    %536 = arith.addf %527, %535 : vector<8x128xf32>
    %537 = vector.broadcast %38 : f32 to vector<8x128xf32>
    %538 = arith.mulf %193, %537 : vector<8x128xf32>
    %539 = vector.broadcast %102 : f32 to vector<8x128xf32>
    %540 = arith.addf %538, %539 : vector<8x128xf32>
    %cst_169 = arith.constant 0.000000e+00 : f32
    %541 = vector.broadcast %cst_169 : f32 to vector<8x128xf32>
    %542 = arith.maximumf %540, %541 : vector<8x128xf32>
    %543 = vector.broadcast %166 : f32 to vector<8x128xf32>
    %544 = arith.mulf %543, %542 : vector<8x128xf32>
    %545 = arith.addf %536, %544 : vector<8x128xf32>
    %546 = vector.broadcast %39 : f32 to vector<8x128xf32>
    %547 = arith.mulf %193, %546 : vector<8x128xf32>
    %548 = vector.broadcast %103 : f32 to vector<8x128xf32>
    %549 = arith.addf %547, %548 : vector<8x128xf32>
    %cst_170 = arith.constant 0.000000e+00 : f32
    %550 = vector.broadcast %cst_170 : f32 to vector<8x128xf32>
    %551 = arith.maximumf %549, %550 : vector<8x128xf32>
    %552 = vector.broadcast %167 : f32 to vector<8x128xf32>
    %553 = arith.mulf %552, %551 : vector<8x128xf32>
    %554 = arith.addf %545, %553 : vector<8x128xf32>
    %555 = vector.broadcast %40 : f32 to vector<8x128xf32>
    %556 = arith.mulf %193, %555 : vector<8x128xf32>
    %557 = vector.broadcast %104 : f32 to vector<8x128xf32>
    %558 = arith.addf %556, %557 : vector<8x128xf32>
    %cst_171 = arith.constant 0.000000e+00 : f32
    %559 = vector.broadcast %cst_171 : f32 to vector<8x128xf32>
    %560 = arith.maximumf %558, %559 : vector<8x128xf32>
    %561 = vector.broadcast %168 : f32 to vector<8x128xf32>
    %562 = arith.mulf %561, %560 : vector<8x128xf32>
    %563 = arith.addf %554, %562 : vector<8x128xf32>
    %564 = vector.broadcast %41 : f32 to vector<8x128xf32>
    %565 = arith.mulf %193, %564 : vector<8x128xf32>
    %566 = vector.broadcast %105 : f32 to vector<8x128xf32>
    %567 = arith.addf %565, %566 : vector<8x128xf32>
    %cst_172 = arith.constant 0.000000e+00 : f32
    %568 = vector.broadcast %cst_172 : f32 to vector<8x128xf32>
    %569 = arith.maximumf %567, %568 : vector<8x128xf32>
    %570 = vector.broadcast %169 : f32 to vector<8x128xf32>
    %571 = arith.mulf %570, %569 : vector<8x128xf32>
    %572 = arith.addf %563, %571 : vector<8x128xf32>
    %573 = vector.broadcast %42 : f32 to vector<8x128xf32>
    %574 = arith.mulf %193, %573 : vector<8x128xf32>
    %575 = vector.broadcast %106 : f32 to vector<8x128xf32>
    %576 = arith.addf %574, %575 : vector<8x128xf32>
    %cst_173 = arith.constant 0.000000e+00 : f32
    %577 = vector.broadcast %cst_173 : f32 to vector<8x128xf32>
    %578 = arith.maximumf %576, %577 : vector<8x128xf32>
    %579 = vector.broadcast %170 : f32 to vector<8x128xf32>
    %580 = arith.mulf %579, %578 : vector<8x128xf32>
    %581 = arith.addf %572, %580 : vector<8x128xf32>
    %582 = vector.broadcast %43 : f32 to vector<8x128xf32>
    %583 = arith.mulf %193, %582 : vector<8x128xf32>
    %584 = vector.broadcast %107 : f32 to vector<8x128xf32>
    %585 = arith.addf %583, %584 : vector<8x128xf32>
    %cst_174 = arith.constant 0.000000e+00 : f32
    %586 = vector.broadcast %cst_174 : f32 to vector<8x128xf32>
    %587 = arith.maximumf %585, %586 : vector<8x128xf32>
    %588 = vector.broadcast %171 : f32 to vector<8x128xf32>
    %589 = arith.mulf %588, %587 : vector<8x128xf32>
    %590 = arith.addf %581, %589 : vector<8x128xf32>
    %591 = vector.broadcast %44 : f32 to vector<8x128xf32>
    %592 = arith.mulf %193, %591 : vector<8x128xf32>
    %593 = vector.broadcast %108 : f32 to vector<8x128xf32>
    %594 = arith.addf %592, %593 : vector<8x128xf32>
    %cst_175 = arith.constant 0.000000e+00 : f32
    %595 = vector.broadcast %cst_175 : f32 to vector<8x128xf32>
    %596 = arith.maximumf %594, %595 : vector<8x128xf32>
    %597 = vector.broadcast %172 : f32 to vector<8x128xf32>
    %598 = arith.mulf %597, %596 : vector<8x128xf32>
    %599 = arith.addf %590, %598 : vector<8x128xf32>
    %600 = vector.broadcast %45 : f32 to vector<8x128xf32>
    %601 = arith.mulf %193, %600 : vector<8x128xf32>
    %602 = vector.broadcast %109 : f32 to vector<8x128xf32>
    %603 = arith.addf %601, %602 : vector<8x128xf32>
    %cst_176 = arith.constant 0.000000e+00 : f32
    %604 = vector.broadcast %cst_176 : f32 to vector<8x128xf32>
    %605 = arith.maximumf %603, %604 : vector<8x128xf32>
    %606 = vector.broadcast %173 : f32 to vector<8x128xf32>
    %607 = arith.mulf %606, %605 : vector<8x128xf32>
    %608 = arith.addf %599, %607 : vector<8x128xf32>
    %609 = vector.broadcast %46 : f32 to vector<8x128xf32>
    %610 = arith.mulf %193, %609 : vector<8x128xf32>
    %611 = vector.broadcast %110 : f32 to vector<8x128xf32>
    %612 = arith.addf %610, %611 : vector<8x128xf32>
    %cst_177 = arith.constant 0.000000e+00 : f32
    %613 = vector.broadcast %cst_177 : f32 to vector<8x128xf32>
    %614 = arith.maximumf %612, %613 : vector<8x128xf32>
    %615 = vector.broadcast %174 : f32 to vector<8x128xf32>
    %616 = arith.mulf %615, %614 : vector<8x128xf32>
    %617 = arith.addf %608, %616 : vector<8x128xf32>
    %618 = vector.broadcast %47 : f32 to vector<8x128xf32>
    %619 = arith.mulf %193, %618 : vector<8x128xf32>
    %620 = vector.broadcast %111 : f32 to vector<8x128xf32>
    %621 = arith.addf %619, %620 : vector<8x128xf32>
    %cst_178 = arith.constant 0.000000e+00 : f32
    %622 = vector.broadcast %cst_178 : f32 to vector<8x128xf32>
    %623 = arith.maximumf %621, %622 : vector<8x128xf32>
    %624 = vector.broadcast %175 : f32 to vector<8x128xf32>
    %625 = arith.mulf %624, %623 : vector<8x128xf32>
    %626 = arith.addf %617, %625 : vector<8x128xf32>
    %627 = vector.broadcast %48 : f32 to vector<8x128xf32>
    %628 = arith.mulf %193, %627 : vector<8x128xf32>
    %629 = vector.broadcast %112 : f32 to vector<8x128xf32>
    %630 = arith.addf %628, %629 : vector<8x128xf32>
    %cst_179 = arith.constant 0.000000e+00 : f32
    %631 = vector.broadcast %cst_179 : f32 to vector<8x128xf32>
    %632 = arith.maximumf %630, %631 : vector<8x128xf32>
    %633 = vector.broadcast %176 : f32 to vector<8x128xf32>
    %634 = arith.mulf %633, %632 : vector<8x128xf32>
    %635 = arith.addf %626, %634 : vector<8x128xf32>
    %636 = vector.broadcast %49 : f32 to vector<8x128xf32>
    %637 = arith.mulf %193, %636 : vector<8x128xf32>
    %638 = vector.broadcast %113 : f32 to vector<8x128xf32>
    %639 = arith.addf %637, %638 : vector<8x128xf32>
    %cst_180 = arith.constant 0.000000e+00 : f32
    %640 = vector.broadcast %cst_180 : f32 to vector<8x128xf32>
    %641 = arith.maximumf %639, %640 : vector<8x128xf32>
    %642 = vector.broadcast %177 : f32 to vector<8x128xf32>
    %643 = arith.mulf %642, %641 : vector<8x128xf32>
    %644 = arith.addf %635, %643 : vector<8x128xf32>
    %645 = vector.broadcast %50 : f32 to vector<8x128xf32>
    %646 = arith.mulf %193, %645 : vector<8x128xf32>
    %647 = vector.broadcast %114 : f32 to vector<8x128xf32>
    %648 = arith.addf %646, %647 : vector<8x128xf32>
    %cst_181 = arith.constant 0.000000e+00 : f32
    %649 = vector.broadcast %cst_181 : f32 to vector<8x128xf32>
    %650 = arith.maximumf %648, %649 : vector<8x128xf32>
    %651 = vector.broadcast %178 : f32 to vector<8x128xf32>
    %652 = arith.mulf %651, %650 : vector<8x128xf32>
    %653 = arith.addf %644, %652 : vector<8x128xf32>
    %654 = vector.broadcast %51 : f32 to vector<8x128xf32>
    %655 = arith.mulf %193, %654 : vector<8x128xf32>
    %656 = vector.broadcast %115 : f32 to vector<8x128xf32>
    %657 = arith.addf %655, %656 : vector<8x128xf32>
    %cst_182 = arith.constant 0.000000e+00 : f32
    %658 = vector.broadcast %cst_182 : f32 to vector<8x128xf32>
    %659 = arith.maximumf %657, %658 : vector<8x128xf32>
    %660 = vector.broadcast %179 : f32 to vector<8x128xf32>
    %661 = arith.mulf %660, %659 : vector<8x128xf32>
    %662 = arith.addf %653, %661 : vector<8x128xf32>
    %663 = vector.broadcast %52 : f32 to vector<8x128xf32>
    %664 = arith.mulf %193, %663 : vector<8x128xf32>
    %665 = vector.broadcast %116 : f32 to vector<8x128xf32>
    %666 = arith.addf %664, %665 : vector<8x128xf32>
    %cst_183 = arith.constant 0.000000e+00 : f32
    %667 = vector.broadcast %cst_183 : f32 to vector<8x128xf32>
    %668 = arith.maximumf %666, %667 : vector<8x128xf32>
    %669 = vector.broadcast %180 : f32 to vector<8x128xf32>
    %670 = arith.mulf %669, %668 : vector<8x128xf32>
    %671 = arith.addf %662, %670 : vector<8x128xf32>
    %672 = vector.broadcast %53 : f32 to vector<8x128xf32>
    %673 = arith.mulf %193, %672 : vector<8x128xf32>
    %674 = vector.broadcast %117 : f32 to vector<8x128xf32>
    %675 = arith.addf %673, %674 : vector<8x128xf32>
    %cst_184 = arith.constant 0.000000e+00 : f32
    %676 = vector.broadcast %cst_184 : f32 to vector<8x128xf32>
    %677 = arith.maximumf %675, %676 : vector<8x128xf32>
    %678 = vector.broadcast %181 : f32 to vector<8x128xf32>
    %679 = arith.mulf %678, %677 : vector<8x128xf32>
    %680 = arith.addf %671, %679 : vector<8x128xf32>
    %681 = vector.broadcast %54 : f32 to vector<8x128xf32>
    %682 = arith.mulf %193, %681 : vector<8x128xf32>
    %683 = vector.broadcast %118 : f32 to vector<8x128xf32>
    %684 = arith.addf %682, %683 : vector<8x128xf32>
    %cst_185 = arith.constant 0.000000e+00 : f32
    %685 = vector.broadcast %cst_185 : f32 to vector<8x128xf32>
    %686 = arith.maximumf %684, %685 : vector<8x128xf32>
    %687 = vector.broadcast %182 : f32 to vector<8x128xf32>
    %688 = arith.mulf %687, %686 : vector<8x128xf32>
    %689 = arith.addf %680, %688 : vector<8x128xf32>
    %690 = vector.broadcast %55 : f32 to vector<8x128xf32>
    %691 = arith.mulf %193, %690 : vector<8x128xf32>
    %692 = vector.broadcast %119 : f32 to vector<8x128xf32>
    %693 = arith.addf %691, %692 : vector<8x128xf32>
    %cst_186 = arith.constant 0.000000e+00 : f32
    %694 = vector.broadcast %cst_186 : f32 to vector<8x128xf32>
    %695 = arith.maximumf %693, %694 : vector<8x128xf32>
    %696 = vector.broadcast %183 : f32 to vector<8x128xf32>
    %697 = arith.mulf %696, %695 : vector<8x128xf32>
    %698 = arith.addf %689, %697 : vector<8x128xf32>
    %699 = vector.broadcast %56 : f32 to vector<8x128xf32>
    %700 = arith.mulf %193, %699 : vector<8x128xf32>
    %701 = vector.broadcast %120 : f32 to vector<8x128xf32>
    %702 = arith.addf %700, %701 : vector<8x128xf32>
    %cst_187 = arith.constant 0.000000e+00 : f32
    %703 = vector.broadcast %cst_187 : f32 to vector<8x128xf32>
    %704 = arith.maximumf %702, %703 : vector<8x128xf32>
    %705 = vector.broadcast %184 : f32 to vector<8x128xf32>
    %706 = arith.mulf %705, %704 : vector<8x128xf32>
    %707 = arith.addf %698, %706 : vector<8x128xf32>
    %708 = vector.broadcast %57 : f32 to vector<8x128xf32>
    %709 = arith.mulf %193, %708 : vector<8x128xf32>
    %710 = vector.broadcast %121 : f32 to vector<8x128xf32>
    %711 = arith.addf %709, %710 : vector<8x128xf32>
    %cst_188 = arith.constant 0.000000e+00 : f32
    %712 = vector.broadcast %cst_188 : f32 to vector<8x128xf32>
    %713 = arith.maximumf %711, %712 : vector<8x128xf32>
    %714 = vector.broadcast %185 : f32 to vector<8x128xf32>
    %715 = arith.mulf %714, %713 : vector<8x128xf32>
    %716 = arith.addf %707, %715 : vector<8x128xf32>
    %717 = vector.broadcast %58 : f32 to vector<8x128xf32>
    %718 = arith.mulf %193, %717 : vector<8x128xf32>
    %719 = vector.broadcast %122 : f32 to vector<8x128xf32>
    %720 = arith.addf %718, %719 : vector<8x128xf32>
    %cst_189 = arith.constant 0.000000e+00 : f32
    %721 = vector.broadcast %cst_189 : f32 to vector<8x128xf32>
    %722 = arith.maximumf %720, %721 : vector<8x128xf32>
    %723 = vector.broadcast %186 : f32 to vector<8x128xf32>
    %724 = arith.mulf %723, %722 : vector<8x128xf32>
    %725 = arith.addf %716, %724 : vector<8x128xf32>
    %726 = vector.broadcast %59 : f32 to vector<8x128xf32>
    %727 = arith.mulf %193, %726 : vector<8x128xf32>
    %728 = vector.broadcast %123 : f32 to vector<8x128xf32>
    %729 = arith.addf %727, %728 : vector<8x128xf32>
    %cst_190 = arith.constant 0.000000e+00 : f32
    %730 = vector.broadcast %cst_190 : f32 to vector<8x128xf32>
    %731 = arith.maximumf %729, %730 : vector<8x128xf32>
    %732 = vector.broadcast %187 : f32 to vector<8x128xf32>
    %733 = arith.mulf %732, %731 : vector<8x128xf32>
    %734 = arith.addf %725, %733 : vector<8x128xf32>
    %735 = vector.broadcast %60 : f32 to vector<8x128xf32>
    %736 = arith.mulf %193, %735 : vector<8x128xf32>
    %737 = vector.broadcast %124 : f32 to vector<8x128xf32>
    %738 = arith.addf %736, %737 : vector<8x128xf32>
    %cst_191 = arith.constant 0.000000e+00 : f32
    %739 = vector.broadcast %cst_191 : f32 to vector<8x128xf32>
    %740 = arith.maximumf %738, %739 : vector<8x128xf32>
    %741 = vector.broadcast %188 : f32 to vector<8x128xf32>
    %742 = arith.mulf %741, %740 : vector<8x128xf32>
    %743 = arith.addf %734, %742 : vector<8x128xf32>
    %744 = vector.broadcast %61 : f32 to vector<8x128xf32>
    %745 = arith.mulf %193, %744 : vector<8x128xf32>
    %746 = vector.broadcast %125 : f32 to vector<8x128xf32>
    %747 = arith.addf %745, %746 : vector<8x128xf32>
    %cst_192 = arith.constant 0.000000e+00 : f32
    %748 = vector.broadcast %cst_192 : f32 to vector<8x128xf32>
    %749 = arith.maximumf %747, %748 : vector<8x128xf32>
    %750 = vector.broadcast %189 : f32 to vector<8x128xf32>
    %751 = arith.mulf %750, %749 : vector<8x128xf32>
    %752 = arith.addf %743, %751 : vector<8x128xf32>
    %753 = vector.broadcast %62 : f32 to vector<8x128xf32>
    %754 = arith.mulf %193, %753 : vector<8x128xf32>
    %755 = vector.broadcast %126 : f32 to vector<8x128xf32>
    %756 = arith.addf %754, %755 : vector<8x128xf32>
    %cst_193 = arith.constant 0.000000e+00 : f32
    %757 = vector.broadcast %cst_193 : f32 to vector<8x128xf32>
    %758 = arith.maximumf %756, %757 : vector<8x128xf32>
    %759 = vector.broadcast %190 : f32 to vector<8x128xf32>
    %760 = arith.mulf %759, %758 : vector<8x128xf32>
    %761 = arith.addf %752, %760 : vector<8x128xf32>
    %762 = vector.broadcast %63 : f32 to vector<8x128xf32>
    %763 = arith.mulf %193, %762 : vector<8x128xf32>
    %764 = vector.broadcast %127 : f32 to vector<8x128xf32>
    %765 = arith.addf %763, %764 : vector<8x128xf32>
    %cst_194 = arith.constant 0.000000e+00 : f32
    %766 = vector.broadcast %cst_194 : f32 to vector<8x128xf32>
    %767 = arith.maximumf %765, %766 : vector<8x128xf32>
    %768 = vector.broadcast %191 : f32 to vector<8x128xf32>
    %769 = arith.mulf %768, %767 : vector<8x128xf32>
    %770 = arith.addf %761, %769 : vector<8x128xf32>
    %771 = vector.broadcast %192 : f32 to vector<8x128xf32>
    %772 = arith.addf %770, %771 : vector<8x128xf32>
    %c0_195 = arith.constant 0 : index
    %c0_196 = arith.constant 0 : index
    %773 = vector.load %arg6[%c0_195, %c0_196] : memref<8x128xf32, #tpu.memory_space<vmem>>, vector<8x128xf32>
    tpu.vector_store %arg6[%c0_195, %c0_196], %772 {strides = array<i32>} : memref<8x128xf32, #tpu.memory_space<vmem>>, vector<8x128xf32>,
    return
  }
  func.func @transform_0(%arg0: i32) -> (i32, i32) {
    %c0_i32 = arith.constant 0 : i32
    %c0_i32_0 = arith.constant 0 : i32
    return %arg0, %c0_i32 : i32, i32
  }
  func.func @transform_1(%arg0: i32) -> i32 {
    %c0_i32 = arith.constant 0 : i32
    %c0_i32_0 = arith.constant 0 : i32
    return %c0_i32 : i32
  }
  func.func @transform_2(%arg0: i32) -> i32 {
    %c0_i32 = arith.constant 0 : i32
    %c0_i32_0 = arith.constant 0 : i32
    return %c0_i32 : i32
  }
  func.func @transform_3(%arg0: i32) -> i32 {
    %c0_i32 = arith.constant 0 : i32
    %c0_i32_0 = arith.constant 0 : i32
    return %c0_i32 : i32
  }
  func.func @transform_4(%arg0: i32) -> i32 {
    %c0_i32 = arith.constant 0 : i32
    %c0_i32_0 = arith.constant 0 : i32
    return %c0_i32 : i32
  }
  func.func @transform_5(%arg0: i32) -> (i32, i32) {
    %c0_i32 = arith.constant 0 : i32
    %c0_i32_0 = arith.constant 0 : i32
    return %arg0, %c0_i32 : i32, i32
  }
}

</mosaic_0001>

<llo_original>
// kernel: fitting_gelu.1
$region0: #{fitting_gelu.1}
  #allocation0 [shape = 'u32[]', space=smem, size = 0x4, offset = 0x4, fixed_abs, tag = 'smem constant byte address 0x4 - core index']
  #allocation1 [shape = 'u32[72,128]{1,0:T(1,128)}', space=vmem, size = 0x9000, scoped, tag = 'internal scratch']
  #allocation2 [shape = 'f32[1]{0:T(128)S(6)}', space=smem, size = 0x200, scoped, tag = 'scoped memory for fitting_gelu.1']
  %s0 = inlined_call_operand.vmem [shape: f32[16,128], index: 0, kind: input, shape index: {}]
  %s1 = inlined_call_operand.vmem [shape: f32[64], index: 1, kind: input, shape index: {}]
  %s2 = inlined_call_operand.vmem [shape: f32[64], index: 2, kind: input, shape index: {}]
  %s3 = inlined_call_operand.vmem [shape: f32[64], index: 3, kind: input, shape index: {}]
  %s4 = inlined_call_operand.<no memory space> [shape: f32[1], index: 4, kind: input, shape index: {}]
  %s5 = inlined_call_operand.vmem [shape: f32[16,128], index: 5, kind: output, shape index: {}]
  %s6 = sld [smem:[#allocation0]]
  $region65: #{fitting_gelu.1} parent=0
    _
  %s8 = ssub.s32 1, %s6
  %s9 = scalar_select 0, %s8, %s6
  %10 = sst [smem:[#allocation2]] %s4
  $region1: #{fitting_gelu.1} parent=0
    #allocation3 [shape = 'u8[512]{0}', space=smem, size = 0x200, scoped, tag = 'input window, operand 1, single buffered']
    #allocation4 [shape = 's32[2]{0}', space=sflag, size = 0x8, scoped, tag = 'scoped memory for fitting_gelu.1']
    #allocation5 [shape = 'u8[512]{0}', space=smem, size = 0x200, scoped, tag = 'input window, operand 2, single buffered']
    #allocation6 [shape = 's32[1]{0}', space=sflag, size = 0x4, scoped, tag = 'scoped memory for fitting_gelu.1']
    #allocation7 [shape = 'u8[512]{0}', space=smem, size = 0x200, scoped, tag = 'input window, operand 3, single buffered']
    %11 = vsyncpa [#allocation4], 0
    %12 = vsyncpa [#allocation6], 0
    loop: start=0, step=1, limit=4
    $region2: #{fitting_gelu.1} parent=1 // loop_pre_header
      _
    $region3: #{fitting_gelu.1} parent=1 // loop_header
      %s14 = sphi 0, %s18
      %p15 = scmp.ge.s32.totalorder %s14, 4
      %s24 = sphi 0, %s26
      %s27 = sphi 0, %s24
      %s28 = sphi 0, %s27
      %s44 = sphi 0, %s28
      %s48 = sphi 0, %s48
      %s50 = sphi 0, %s48
      %s51 = sphi 0, %s50
      %s65 = sphi 0, %s51
      %s69 = sphi 0, %s69
      %s71 = sphi 0, %s69
      %s72 = sphi 0, %s71
      %s86 = sphi 0, %s72
      %s90 = sphi 0, %s90
      %s92 = sphi 0, %s90
      %s93 = sphi 0, %s92
      %s107 = sphi 0, %s93
      %s111 = sphi 0, %s111
      %s113 = sphi 0, %s111
      %s114 = sphi 0, %s113
      %s128 = sphi 0, %s114
      %s134 = sphi 0, %s136
      %s137 = sphi 0, %s134
      %s138 = sphi 0, %s137
      %s154 = sphi 0, %s138
    $region4: #{fitting_gelu.1} parent=1 // loop_header_branch
      %17 = sbr.rel (%p15) target = $region8
    $region5: #{fitting_gelu.1} parent=1 // loop_body
      %s19 = ssub.s32 %s14, 1
      %s20 = ssub.s32 %s14, 2
      %s21 = sadd.s32 %s14, 1
      %s22 = ssub.s32 %s14, %s21
      %p23 = scmp.eq.s32.totalorder %s22, 0
      %s25 = sadd.s32 %s24, 1
      %s26 = scalar_select %p23, %s24, %s25
      %p29 = pneg %p23
      %p30 = scmp.eq.s32.totalorder %s14, 1
      %p31 = por %p29, %p30
      %p32 = scmp.ne.s32.totalorder %s24, %s27
      %p33 = scmp.eq.s32.totalorder %s14, 0
      %p34 = por %p32, %p33
      %p35 = scmp.ne.s32.totalorder %s24, %s27
      %p36 = scmp.eq.s32.totalorder %s19, 1
      %p37 = por %p35, %p36
      %p38 = scmp.ne.s32.totalorder %s27, %s28
      %p39 = scmp.eq.s32.totalorder %s19, 0
      %p40 = por %p38, %p39
      %p41 = scmp.ne.s32.totalorder %s27, %s28
      %p42 = scmp.eq.s32.totalorder %s20, 1
      %p43 = por %p41, %p42
      %p45 = scmp.ne.s32.totalorder %s28, %s44
      %p46 = scmp.eq.s32.totalorder %s20, 0
      %p47 = por %p45, %p46
      %s49 = sadd.s32 %s48, 1
      %p52 = scmp.eq.s32.totalorder %s14, 1
      %p53 = scmp.ne.s32.totalorder %s48, %s50
      %p54 = scmp.eq.s32.totalorder %s14, 0
      %p55 = por %p53, %p54
      %p56 = scmp.ne.s32.totalorder %s48, %s50
      %p57 = scmp.eq.s32.totalorder %s19, 1
      %p58 = por %p56, %p57
      %p59 = scmp.ne.s32.totalorder %s50, %s51
      %p60 = scmp.eq.s32.totalorder %s19, 0
      %p61 = por %p59, %p60
      %p62 = scmp.ne.s32.totalorder %s50, %s51
      %p63 = scmp.eq.s32.totalorder %s20, 1
      %p64 = por %p62, %p63
      %p66 = scmp.ne.s32.totalorder %s51, %s65
      %p67 = scmp.eq.s32.totalorder %s20, 0
      %p68 = por %p66, %p67
      %s70 = sadd.s32 %s69, 1
      %p73 = scmp.eq.s32.totalorder %s14, 1
      %p74 = scmp.ne.s32.totalorder %s69, %s71
      %p75 = scmp.eq.s32.totalorder %s14, 0
      %p76 = por %p74, %p75
      %p77 = scmp.ne.s32.totalorder %s69, %s71
      %p78 = scmp.eq.s32.totalorder %s19, 1
      %p79 = por %p77, %p78
      %p80 = scmp.ne.s32.totalorder %s71, %s72
      %p81 = scmp.eq.s32.totalorder %s19, 0
      %p82 = por %p80, %p81
      %p83 = scmp.ne.s32.totalorder %s71, %s72
      %p84 = scmp.eq.s32.totalorder %s20, 1
      %p85 = por %p83, %p84
      %p87 = scmp.ne.s32.totalorder %s72, %s86
      %p88 = scmp.eq.s32.totalorder %s20, 0
      %p89 = por %p87, %p88
      %s91 = sadd.s32 %s90, 1
      %p94 = scmp.eq.s32.totalorder %s14, 1
      %p95 = scmp.ne.s32.totalorder %s90, %s92
      %p96 = scmp.eq.s32.totalorder %s14, 0
      %p97 = por %p95, %p96
      %p98 = scmp.ne.s32.totalorder %s90, %s92
      %p99 = scmp.eq.s32.totalorder %s19, 1
      %p100 = por %p98, %p99
      %p101 = scmp.ne.s32.totalorder %s92, %s93
      %p102 = scmp.eq.s32.totalorder %s19, 0
      %p103 = por %p101, %p102
      %p104 = scmp.ne.s32.totalorder %s92, %s93
      %p105 = scmp.eq.s32.totalorder %s20, 1
      %p106 = por %p104, %p105
      %p108 = scmp.ne.s32.totalorder %s93, %s107
      %p109 = scmp.eq.s32.totalorder %s20, 0
      %p110 = por %p108, %p109
      %s112 = sadd.s32 %s111, 1
      %p115 = scmp.eq.s32.totalorder %s14, 1
      %p116 = scmp.ne.s32.totalorder %s111, %s113
      %p117 = scmp.eq.s32.totalorder %s14, 0
      %p118 = por %p116, %p117
      %p119 = scmp.ne.s32.totalorder %s111, %s113
      %p120 = scmp.eq.s32.totalorder %s19, 1
      %p121 = por %p119, %p120
      %p122 = scmp.ne.s32.totalorder %s113, %s114
      %p123 = scmp.eq.s32.totalorder %s19, 0
      %p124 = por %p122, %p123
      %p125 = scmp.ne.s32.totalorder %s113, %s114
      %p126 = scmp.eq.s32.totalorder %s20, 1
      %p127 = por %p125, %p126
      %p129 = scmp.ne.s32.totalorder %s114, %s128
      %p130 = scmp.eq.s32.totalorder %s20, 0
      %p131 = por %p129, %p130
      %s132 = ssub.s32 %s14, %s21
      %p133 = scmp.eq.s32.totalorder %s132, 0
      %s135 = sadd.s32 %s134, 1
      %s136 = scalar_select %p133, %s134, %s135
      %p139 = pneg %p133
      %p140 = scmp.eq.s32.totalorder %s14, 1
      %p141 = por %p139, %p140
      %p142 = scmp.ne.s32.totalorder %s134, %s137
      %p143 = scmp.eq.s32.totalorder %s14, 0
      %p144 = por %p142, %p143
      %p145 = scmp.ne.s32.totalorder %s134, %s137
      %p146 = scmp.eq.s32.totalorder %s19, 1
      %p147 = por %p145, %p146
      %p148 = scmp.ne.s32.totalorder %s137, %s138
      %p149 = scmp.eq.s32.totalorder %s19, 0
      %p150 = por %p148, %p149
      %p151 = scmp.ne.s32.totalorder %s137, %s138
      %p152 = scmp.eq.s32.totalorder %s20, 1
      %p153 = por %p151, %p152
      %p155 = scmp.ne.s32.totalorder %s138, %s154
      %p156 = scmp.eq.s32.totalorder %s20, 0
      %p157 = por %p155, %p156
      %p158 = scmp.le.s32.totalorder 1, %s14
      %p159 = scmp.lt.s32.totalorder %s14, 3
      %p160 = pnand %p158, %p159
      %p161 = pneg %p160
      // Predicated region
      $region9: #{fitting_gelu.1} parent=5 // pred_check
        _
      $region10: #{fitting_gelu.1} parent=5 // pred_check_branch
        %163 = sbr.rel (%p160) target = $region12
      $region11: #{fitting_gelu.1} parent=5 // pred_region
        %s164 = ssub.s32 %s14, 1
        // Predicated region
        $region13: #{fitting_gelu.1} parent=11 // pred_check
          %p165 = pneg %p61
        $region14: #{fitting_gelu.1} parent=11 // pred_check_branch
          %167 = sbr.rel (%p165) target = $region16
        $region15: #{fitting_gelu.1} parent=11 // pred_region
          %169 = vsyncadd [#allocation4], 0
          %s171 = sshll.u32 %s1, 4
          %s172 = int_to_ptr.vmem [resolvable:$true] %s171
          %174 = dma.vmem_to_smem %s172, 16, [#allocation3], [#allocation4]
        $region16: #{fitting_gelu.1} parent=11 // pred_fallthru
          _
        // Predicated region
        $region17: #{fitting_gelu.1} parent=11 // pred_check
          %p175 = pneg %p82
        $region18: #{fitting_gelu.1} parent=11 // pred_check_branch
          %177 = sbr.rel (%p175) target = $region20
        $region19: #{fitting_gelu.1} parent=11 // pred_region
          %179 = vsyncadd [#allocation6], 0
          %s181 = sshll.u32 %s2, 4
          %s182 = int_to_ptr.vmem [resolvable:$true] %s181
          %184 = dma.vmem_to_smem %s182, 16, [#allocation5], [#allocation6]
        $region20: #{fitting_gelu.1} parent=11 // pred_fallthru
          _
        // Predicated region
        $region21: #{fitting_gelu.1} parent=11 // pred_check
          %p185 = pneg %p103
        $region22: #{fitting_gelu.1} parent=11 // pred_check_branch
          %187 = sbr.rel (%p185) target = $region24
        $region23: #{fitting_gelu.1} parent=11 // pred_region
          %189 = vsyncadd [#allocation6], 0
          %s191 = sshll.u32 %s3, 4
          %s192 = int_to_ptr.vmem [resolvable:$true] %s191
          %194 = dma.vmem_to_smem %s192, 16, [#allocation7], [#allocation6]
        $region24: #{fitting_gelu.1} parent=11 // pred_fallthru
          _
        // Predicated region
        $region25: #{fitting_gelu.1} parent=11 // pred_check
          %p195 = pneg %p124
        $region26: #{fitting_gelu.1} parent=11 // pred_check_branch
          %197 = sbr.rel (%p195) target = $region28
        $region27: #{fitting_gelu.1} parent=11 // pred_region
          _
        $region28: #{fitting_gelu.1} parent=11 // pred_fallthru
          _
      $region12: #{fitting_gelu.1} parent=5 // pred_fallthru
        _
      %p198 = scmp.lt.s32.totalorder %s14, 2
      // Predicated region
      $region29: #{fitting_gelu.1} parent=5 // pred_check
        %p199 = pneg %p198
      $region30: #{fitting_gelu.1} parent=5 // pred_check_branch
        %201 = sbr.rel (%p199) target = $region32
      $region31: #{fitting_gelu.1} parent=5 // pred_region
        // Predicated region
        $region33: #{fitting_gelu.1} parent=31 // pred_check
          %p202 = pneg %p34
        $region34: #{fitting_gelu.1} parent=31 // pred_check_branch
          %204 = sbr.rel (%p202) target = $region36
        $region35: #{fitting_gelu.1} parent=31 // pred_region
          %p205 = scmp.lt.s32.totalorder %s14, 1
          %s206 = scalar_select %p205, %s14, 1
          %s207 = smul.addr %s206, 8
          %s208 = scalar_lea.vmem %s0, %s207
        $region36: #{fitting_gelu.1} parent=31 // pred_fallthru
          _
      $region32: #{fitting_gelu.1} parent=5 // pred_fallthru
        _
      %p209 = scmp.le.s32.totalorder 1, %s14
      %p210 = scmp.lt.s32.totalorder %s14, 3
      %p211 = pnand %p209, %p210
      %p212 = pneg %p211
      // Predicated region
      $region37: #{fitting_gelu.1} parent=5 // pred_check
        _
      $region38: #{fitting_gelu.1} parent=5 // pred_check_branch
        %214 = sbr.rel (%p211) target = $region40
      $region39: #{fitting_gelu.1} parent=5 // pred_region
        %s215 = ssub.s32 %s14, 1
        // Predicated region
        $region41: #{fitting_gelu.1} parent=39 // pred_check
          %p216 = pneg %p61
        $region42: #{fitting_gelu.1} parent=39 // pred_check_branch
          %218 = sbr.rel (%p216) target = $region44
        $region43: #{fitting_gelu.1} parent=39 // pred_region
          %220 = dma.done [#allocation4], 16
        $region44: #{fitting_gelu.1} parent=39 // pred_fallthru
          _
        // Predicated region
        $region45: #{fitting_gelu.1} parent=39 // pred_check
          %p221 = pneg %p82
        $region46: #{fitting_gelu.1} parent=39 // pred_check_branch
          %223 = sbr.rel (%p221) target = $region48
        $region47: #{fitting_gelu.1} parent=39 // pred_region
          %225 = dma.done [#allocation6], 16
        $region48: #{fitting_gelu.1} parent=39 // pred_fallthru
          _
        // Predicated region
        $region49: #{fitting_gelu.1} parent=39 // pred_check
          %p226 = pneg %p103
        $region50: #{fitting_gelu.1} parent=39 // pred_check_branch
          %228 = sbr.rel (%p226) target = $region52
        $region51: #{fitting_gelu.1} parent=39 // pred_region
          %230 = dma.done [#allocation6], 16
        $region52: #{fitting_gelu.1} parent=39 // pred_fallthru
          _
        %231 = sfence
        %p232 = scmp.lt.s32.totalorder %s19, 1
        %s233 = scalar_select %p232, %s19, 1
        %s234 = smul.addr %s233, 8
        %s235 = scalar_lea.vmem %s0, %s234
        %p236 = pneg %p40
        %p237 = pneg %p37
        %p238 = pneg %p61
        %p239 = pneg %p58
        %p240 = pneg %p82
        %p241 = pneg %p79
        %p242 = pneg %p103
        %p243 = pneg %p100
        %p244 = pneg %p124
        %p245 = pneg %p121
        %p246 = pneg %p150
        %p247 = pneg %p147
        %p248 = scmp.lt.s32.totalorder %s19, 1
        %s249 = scalar_select %p248, %s19, 1
        %s250 = smul.addr %s249, 8
        %s251 = scalar_lea.vmem %s5, %s250
        %p252 = scmp.lt.s32.totalorder %s19, 1
        %s253 = scalar_select %p252, %s19, 1
        %s254 = smul.addr %s253, 8
        %s255 = scalar_lea.vmem %s0, %s254
        %p256 = scmp.lt.s32.totalorder %s19, 1
        %s257 = scalar_select %p256, %s19, 1
        %s258 = smul.addr %s257, 8
        %s259 = scalar_lea.vmem %s5, %s258
        %s260 = sld [smem:[#allocation3]]
        %s261 = sld [smem:[#allocation3 + $0x1]]
        %s262 = sld [smem:[#allocation3 + $0x2]]
        %s263 = sld [smem:[#allocation3 + $0x3]]
        %s264 = sld [smem:[#allocation3 + $0x4]]
        %s265 = sld [smem:[#allocation3 + $0x5]]
        %s266 = sld [smem:[#allocation3 + $0x6]]
        %s267 = sld [smem:[#allocation3 + $0x7]]
        %s268 = sld [smem:[#allocation3 + $0x8]]
        %s269 = sld [smem:[#allocation3 + $0x9]]
        %s270 = sld [smem:[#allocation3 + $0xa]]
        %s271 = sld [smem:[#allocation3 + $0xb]]
        %s272 = sld [smem:[#allocation3 + $0xc]]
        %s273 = sld [smem:[#allocation3 + $0xd]]
        %s274 = sld [smem:[#allocation3 + $0xe]]
        %s275 = sld [smem:[#allocation3 + $0xf]]
        %s276 = sld [smem:[#allocation3 + $0x10]]
        %s277 = sld [smem:[#allocation3 + $0x11]]
        %s278 = sld [smem:[#allocation3 + $0x12]]
        %s279 = sld [smem:[#allocation3 + $0x13]]
        %s280 = sld [smem:[#allocation3 + $0x14]]
        %s281 = sld [smem:[#allocation3 + $0x15]]
        %s282 = sld [smem:[#allocation3 + $0x16]]
        %s283 = sld [smem:[#allocation3 + $0x17]]
        %s284 = sld [smem:[#allocation3 + $0x18]]
        %s285 = sld [smem:[#allocation3 + $0x19]]
        %s286 = sld [smem:[#allocation3 + $0x1a]]
        %s287 = sld [smem:[#allocation3 + $0x1b]]
        %s288 = sld [smem:[#allocation3 + $0x1c]]
        %s289 = sld [smem:[#allocation3 + $0x1d]]
        %s290 = sld [smem:[#allocation3 + $0x1e]]
        %s291 = sld [smem:[#allocation3 + $0x1f]]
        %s292 = sld [smem:[#allocation3 + $0x20]]
        %s293 = sld [smem:[#allocation3 + $0x21]]
        %s294 = sld [smem:[#allocation3 + $0x22]]
        %s295 = sld [smem:[#allocation3 + $0x23]]
        %s296 = sld [smem:[#allocation3 + $0x24]]
        %s297 = sld [smem:[#allocation3 + $0x25]]
        %s298 = sld [smem:[#allocation3 + $0x26]]
        %s299 = sld [smem:[#allocation3 + $0x27]]
        %s300 = sld [smem:[#allocation3 + $0x28]]
        %s301 = sld [smem:[#allocation3 + $0x29]]
        %s302 = sld [smem:[#allocation3 + $0x2a]]
        %s303 = sld [smem:[#allocation3 + $0x2b]]
        %s304 = sld [smem:[#allocation3 + $0x2c]]
        %s305 = sld [smem:[#allocation3 + $0x2d]]
        %s306 = sld [smem:[#allocation3 + $0x2e]]
        %s307 = sld [smem:[#allocation3 + $0x2f]]
        %s308 = sld [smem:[#allocation3 + $0x30]]
        %s309 = sld [smem:[#allocation3 + $0x31]]
        %s310 = sld [smem:[#allocation3 + $0x32]]
        %s311 = sld [smem:[#allocation3 + $0x33]]
        %s312 = sld [smem:[#allocation3 + $0x34]]
        %s313 = sld [smem:[#allocation3 + $0x35]]
        %s314 = sld [smem:[#allocation3 + $0x36]]
        %s315 = sld [smem:[#allocation3 + $0x37]]
        %s316 = sld [smem:[#allocation3 + $0x38]]
        %s317 = sld [smem:[#allocation3 + $0x39]]
        %s318 = sld [smem:[#allocation3 + $0x3a]]
        %s319 = sld [smem:[#allocation3 + $0x3b]]
        %s320 = sld [smem:[#allocation3 + $0x3c]]
        %s321 = sld [smem:[#allocation3 + $0x3d]]
        %s322 = sld [smem:[#allocation3 + $0x3e]]
        %s323 = sld [smem:[#allocation3 + $0x3f]]
        %s324 = sld [smem:[#allocation5]]
        %s325 = sld [smem:[#allocation5 + $0x1]]
        %s326 = sld [smem:[#allocation5 + $0x2]]
        %s327 = sld [smem:[#allocation5 + $0x3]]
        %s328 = sld [smem:[#allocation5 + $0x4]]
        %s329 = sld [smem:[#allocation5 + $0x5]]
        %s330 = sld [smem:[#allocation5 + $0x6]]
        %s331 = sld [smem:[#allocation5 + $0x7]]
        %s332 = sld [smem:[#allocation5 + $0x8]]
        %s333 = sld [smem:[#allocation5 + $0x9]]
        %s334 = sld [smem:[#allocation5 + $0xa]]
        %s335 = sld [smem:[#allocation5 + $0xb]]
        %s336 = sld [smem:[#allocation5 + $0xc]]
        %s337 = sld [smem:[#allocation5 + $0xd]]
        %s338 = sld [smem:[#allocation5 + $0xe]]
        %s339 = sld [smem:[#allocation5 + $0xf]]
        %s340 = sld [smem:[#allocation5 + $0x10]]
        %s341 = sld [smem:[#allocation5 + $0x11]]
        %s342 = sld [smem:[#allocation5 + $0x12]]
        %s343 = sld [smem:[#allocation5 + $0x13]]
        %s344 = sld [smem:[#allocation5 + $0x14]]
        %s345 = sld [smem:[#allocation5 + $0x15]]
        %s346 = sld [smem:[#allocation5 + $0x16]]
        %s347 = sld [smem:[#allocation5 + $0x17]]
        %s348 = sld [smem:[#allocation5 + $0x18]]
        %s349 = sld [smem:[#allocation5 + $0x19]]
        %s350 = sld [smem:[#allocation5 + $0x1a]]
        %s351 = sld [smem:[#allocation5 + $0x1b]]
        %s352 = sld [smem:[#allocation5 + $0x1c]]
        %s353 = sld [smem:[#allocation5 + $0x1d]]
        %s354 = sld [smem:[#allocation5 + $0x1e]]
        %s355 = sld [smem:[#allocation5 + $0x1f]]
        %s356 = sld [smem:[#allocation5 + $0x20]]
        %s357 = sld [smem:[#allocation5 + $0x21]]
        %s358 = sld [smem:[#allocation5 + $0x22]]
        %s359 = sld [smem:[#allocation5 + $0x23]]
        %s360 = sld [smem:[#allocation5 + $0x24]]
        %s361 = sld [smem:[#allocation5 + $0x25]]
        %s362 = sld [smem:[#allocation5 + $0x26]]
        %s363 = sld [smem:[#allocation5 + $0x27]]
        %s364 = sld [smem:[#allocation5 + $0x28]]
        %s365 = sld [smem:[#allocation5 + $0x29]]
        %s366 = sld [smem:[#allocation5 + $0x2a]]
        %s367 = sld [smem:[#allocation5 + $0x2b]]
        %s368 = sld [smem:[#allocation5 + $0x2c]]
        %s369 = sld [smem:[#allocation5 + $0x2d]]
        %s370 = sld [smem:[#allocation5 + $0x2e]]
        %s371 = sld [smem:[#allocation5 + $0x2f]]
        %s372 = sld [smem:[#allocation5 + $0x30]]
        %s373 = sld [smem:[#allocation5 + $0x31]]
        %s374 = sld [smem:[#allocation5 + $0x32]]
        %s375 = sld [smem:[#allocation5 + $0x33]]
        %s376 = sld [smem:[#allocation5 + $0x34]]
        %s377 = sld [smem:[#allocation5 + $0x35]]
        %s378 = sld [smem:[#allocation5 + $0x36]]
        %s379 = sld [smem:[#allocation5 + $0x37]]
        %s380 = sld [smem:[#allocation5 + $0x38]]
        %s381 = sld [smem:[#allocation5 + $0x39]]
        %s382 = sld [smem:[#allocation5 + $0x3a]]
        %s383 = sld [smem:[#allocation5 + $0x3b]]
        %s384 = sld [smem:[#allocation5 + $0x3c]]
        %s385 = sld [smem:[#allocation5 + $0x3d]]
        %s386 = sld [smem:[#allocation5 + $0x3e]]
        %s387 = sld [smem:[#allocation5 + $0x3f]]
        %s388 = sld [smem:[#allocation7]]
        %s389 = sld [smem:[#allocation7 + $0x1]]
        %s390 = sld [smem:[#allocation7 + $0x2]]
        %s391 = sld [smem:[#allocation7 + $0x3]]
        %s392 = sld [smem:[#allocation7 + $0x4]]
        %s393 = sld [smem:[#allocation7 + $0x5]]
        %s394 = sld [smem:[#allocation7 + $0x6]]
        %s395 = sld [smem:[#allocation7 + $0x7]]
        %s396 = sld [smem:[#allocation7 + $0x8]]
        %s397 = sld [smem:[#allocation7 + $0x9]]
        %s398 = sld [smem:[#allocation7 + $0xa]]
        %s399 = sld [smem:[#allocation7 + $0xb]]
        %s400 = sld [smem:[#allocation7 + $0xc]]
        %s401 = sld [smem:[#allocation7 + $0xd]]
        %s402 = sld [smem:[#allocation7 + $0xe]]
        %s403 = sld [smem:[#allocation7 + $0xf]]
        %s404 = sld [smem:[#allocation7 + $0x10]]
        %s405 = sld [smem:[#allocation7 + $0x11]]
        %s406 = sld [smem:[#allocation7 + $0x12]]
        %s407 = sld [smem:[#allocation7 + $0x13]]
        %s408 = sld [smem:[#allocation7 + $0x14]]
        %s409 = sld [smem:[#allocation7 + $0x15]]
        %s410 = sld [smem:[#allocation7 + $0x16]]
        %s411 = sld [smem:[#allocation7 + $0x17]]
        %s412 = sld [smem:[#allocation7 + $0x18]]
        %s413 = sld [smem:[#allocation7 + $0x19]]
        %s414 = sld [smem:[#allocation7 + $0x1a]]
        %s415 = sld [smem:[#allocation7 + $0x1b]]
        %s416 = sld [smem:[#allocation7 + $0x1c]]
        %s417 = sld [smem:[#allocation7 + $0x1d]]
        %s418 = sld [smem:[#allocation7 + $0x1e]]
        %s419 = sld [smem:[#allocation7 + $0x1f]]
        %s420 = sld [smem:[#allocation7 + $0x20]]
        %s421 = sld [smem:[#allocation7 + $0x21]]
        %s422 = sld [smem:[#allocation7 + $0x22]]
        %s423 = sld [smem:[#allocation7 + $0x23]]
        %s424 = sld [smem:[#allocation7 + $0x24]]
        %s425 = sld [smem:[#allocation7 + $0x25]]
        %s426 = sld [smem:[#allocation7 + $0x26]]
        %s427 = sld [smem:[#allocation7 + $0x27]]
        %s428 = sld [smem:[#allocation7 + $0x28]]
        %s429 = sld [smem:[#allocation7 + $0x29]]
        %s430 = sld [smem:[#allocation7 + $0x2a]]
        %s431 = sld [smem:[#allocation7 + $0x2b]]
        %s432 = sld [smem:[#allocation7 + $0x2c]]
        %s433 = sld [smem:[#allocation7 + $0x2d]]
        %s434 = sld [smem:[#allocation7 + $0x2e]]
        %s435 = sld [smem:[#allocation7 + $0x2f]]
        %s436 = sld [smem:[#allocation7 + $0x30]]
        %s437 = sld [smem:[#allocation7 + $0x31]]
        %s438 = sld [smem:[#allocation7 + $0x32]]
        %s439 = sld [smem:[#allocation7 + $0x33]]
        %s440 = sld [smem:[#allocation7 + $0x34]]
        %s441 = sld [smem:[#allocation7 + $0x35]]
        %s442 = sld [smem:[#allocation7 + $0x36]]
        %s443 = sld [smem:[#allocation7 + $0x37]]
        %s444 = sld [smem:[#allocation7 + $0x38]]
        %s445 = sld [smem:[#allocation7 + $0x39]]
        %s446 = sld [smem:[#allocation7 + $0x3a]]
        %s447 = sld [smem:[#allocation7 + $0x3b]]
        %s448 = sld [smem:[#allocation7 + $0x3c]]
        %s449 = sld [smem:[#allocation7 + $0x3d]]
        %s450 = sld [smem:[#allocation7 + $0x3e]]
        %s451 = sld [smem:[#allocation7 + $0x3f]]
        %s452 = sld [smem:[#allocation2]]
        %v453 = vld [vmem:[%s255] sm:$0xff]
        %v454 = vstv %s260
        %v455 = vmul.f32 %v453, %v454
        %v456 = vstv %s324
        %v457 = vadd.f32 %v455, %v456
        %v458 = vmax.f32 %v457, 0.0
        %v459 = vstv %s388
        %v460 = vmul.f32 %v459, %v458
        %v461 = vadd.f32 %v460, 0.0
        %v462 = vstv %s261
        %v463 = vmul.f32 %v453, %v462
        %v464 = vstv %s325
        %v465 = vadd.f32 %v463, %v464
        %v466 = vmax.f32 %v465, 0.0
        %v467 = vstv %s389
        %v468 = vmul.f32 %v467, %v466
        %v469 = vadd.f32 %v461, %v468
        %v470 = vstv %s262
        %v471 = vmul.f32 %v453, %v470
        %v472 = vstv %s326
        %v473 = vadd.f32 %v471, %v472
        %v474 = vmax.f32 %v473, 0.0
        %v475 = vstv %s390
        %v476 = vmul.f32 %v475, %v474
        %v477 = vadd.f32 %v469, %v476
        %v478 = vstv %s263
        %v479 = vmul.f32 %v453, %v478
        %v480 = vstv %s327
        %v481 = vadd.f32 %v479, %v480
        %v482 = vmax.f32 %v481, 0.0
        %v483 = vstv %s391
        %v484 = vmul.f32 %v483, %v482
        %v485 = vadd.f32 %v477, %v484
        %v486 = vstv %s264
        %v487 = vmul.f32 %v453, %v486
        %v488 = vstv %s328
        %v489 = vadd.f32 %v487, %v488
        %v490 = vmax.f32 %v489, 0.0
        %v491 = vstv %s392
        %v492 = vmul.f32 %v491, %v490
        %v493 = vadd.f32 %v485, %v492
        %v494 = vstv %s265
        %v495 = vmul.f32 %v453, %v494
        %v496 = vstv %s329
        %v497 = vadd.f32 %v495, %v496
        %v498 = vmax.f32 %v497, 0.0
        %v499 = vstv %s393
        %v500 = vmul.f32 %v499, %v498
        %v501 = vadd.f32 %v493, %v500
        %v502 = vstv %s266
        %v503 = vmul.f32 %v453, %v502
        %v504 = vstv %s330
        %v505 = vadd.f32 %v503, %v504
        %v506 = vmax.f32 %v505, 0.0
        %v507 = vstv %s394
        %v508 = vmul.f32 %v507, %v506
        %v509 = vadd.f32 %v501, %v508
        %v510 = vstv %s267
        %v511 = vmul.f32 %v453, %v510
        %v512 = vstv %s331
        %v513 = vadd.f32 %v511, %v512
        %v514 = vmax.f32 %v513, 0.0
        %v515 = vstv %s395
        %v516 = vmul.f32 %v515, %v514
        %v517 = vadd.f32 %v509, %v516
        %v518 = vstv %s268
        %v519 = vmul.f32 %v453, %v518
        %v520 = vstv %s332
        %v521 = vadd.f32 %v519, %v520
        %v522 = vmax.f32 %v521, 0.0
        %v523 = vstv %s396
        %v524 = vmul.f32 %v523, %v522
        %v525 = vadd.f32 %v517, %v524
        %v526 = vstv %s269
        %v527 = vmul.f32 %v453, %v526
        %v528 = vstv %s333
        %v529 = vadd.f32 %v527, %v528
        %v530 = vmax.f32 %v529, 0.0
        %v531 = vstv %s397
        %v532 = vmul.f32 %v531, %v530
        %v533 = vadd.f32 %v525, %v532
        %v534 = vstv %s270
        %v535 = vmul.f32 %v453, %v534
        %v536 = vstv %s334
        %v537 = vadd.f32 %v535, %v536
        %v538 = vmax.f32 %v537, 0.0
        %v539 = vstv %s398
        %v540 = vmul.f32 %v539, %v538
        %v541 = vadd.f32 %v533, %v540
        %v542 = vstv %s271
        %v543 = vmul.f32 %v453, %v542
        %v544 = vstv %s335
        %v545 = vadd.f32 %v543, %v544
        %v546 = vmax.f32 %v545, 0.0
        %v547 = vstv %s399
        %v548 = vmul.f32 %v547, %v546
        %v549 = vadd.f32 %v541, %v548
        %v550 = vstv %s272
        %v551 = vmul.f32 %v453, %v550
        %v552 = vstv %s336
        %v553 = vadd.f32 %v551, %v552
        %v554 = vmax.f32 %v553, 0.0
        %v555 = vstv %s400
        %v556 = vmul.f32 %v555, %v554
        %v557 = vadd.f32 %v549, %v556
        %v558 = vstv %s273
        %v559 = vmul.f32 %v453, %v558
        %v560 = vstv %s337
        %v561 = vadd.f32 %v559, %v560
        %v562 = vmax.f32 %v561, 0.0
        %v563 = vstv %s401
        %v564 = vmul.f32 %v563, %v562
        %v565 = vadd.f32 %v557, %v564
        %v566 = vstv %s274
        %v567 = vmul.f32 %v453, %v566
        %v568 = vstv %s338
        %v569 = vadd.f32 %v567, %v568
        %v570 = vmax.f32 %v569, 0.0
        %v571 = vstv %s402
        %v572 = vmul.f32 %v571, %v570
        %v573 = vadd.f32 %v565, %v572
        %v574 = vstv %s275
        %v575 = vmul.f32 %v453, %v574
        %v576 = vstv %s339
        %v577 = vadd.f32 %v575, %v576
        %v578 = vmax.f32 %v577, 0.0
        %v579 = vstv %s403
        %v580 = vmul.f32 %v579, %v578
        %v581 = vadd.f32 %v573, %v580
        %v582 = vstv %s276
        %v583 = vmul.f32 %v453, %v582
        %v584 = vstv %s340
        %v585 = vadd.f32 %v583, %v584
        %v586 = vmax.f32 %v585, 0.0
        %v587 = vstv %s404
        %v588 = vmul.f32 %v587, %v586
        %v589 = vadd.f32 %v581, %v588
        %v590 = vstv %s277
        %v591 = vmul.f32 %v453, %v590
        %v592 = vstv %s341
        %v593 = vadd.f32 %v591, %v592
        %v594 = vmax.f32 %v593, 0.0
        %v595 = vstv %s405
        %v596 = vmul.f32 %v595, %v594
        %v597 = vadd.f32 %v589, %v596
        %v598 = vstv %s278
        %v599 = vmul.f32 %v453, %v598
        %v600 = vstv %s342
        %v601 = vadd.f32 %v599, %v600
        %v602 = vmax.f32 %v601, 0.0
        %v603 = vstv %s406
        %v604 = vmul.f32 %v603, %v602
        %v605 = vadd.f32 %v597, %v604
        %v606 = vstv %s279
        %v607 = vmul.f32 %v453, %v606
        %v608 = vstv %s343
        %v609 = vadd.f32 %v607, %v608
        %v610 = vmax.f32 %v609, 0.0
        %v611 = vstv %s407
        %v612 = vmul.f32 %v611, %v610
        %v613 = vadd.f32 %v605, %v612
        %v614 = vstv %s280
        %v615 = vmul.f32 %v453, %v614
        %v616 = vstv %s344
        %v617 = vadd.f32 %v615, %v616
        %v618 = vmax.f32 %v617, 0.0
        %v619 = vstv %s408
        %v620 = vmul.f32 %v619, %v618
        %v621 = vadd.f32 %v613, %v620
        %v622 = vstv %s281
        %v623 = vmul.f32 %v453, %v622
        %v624 = vstv %s345
        %v625 = vadd.f32 %v623, %v624
        %v626 = vmax.f32 %v625, 0.0
        %v627 = vstv %s409
        %v628 = vmul.f32 %v627, %v626
        %v629 = vadd.f32 %v621, %v628
        %v630 = vstv %s282
        %v631 = vmul.f32 %v453, %v630
        %v632 = vstv %s346
        %v633 = vadd.f32 %v631, %v632
        %v634 = vmax.f32 %v633, 0.0
        %v635 = vstv %s410
        %v636 = vmul.f32 %v635, %v634
        %v637 = vadd.f32 %v629, %v636
        %v638 = vstv %s283
        %v639 = vmul.f32 %v453, %v638
        %v640 = vstv %s347
        %v641 = vadd.f32 %v639, %v640
        %v642 = vmax.f32 %v641, 0.0
        %v643 = vstv %s411
        %v644 = vmul.f32 %v643, %v642
        %v645 = vadd.f32 %v637, %v644
        %v646 = vstv %s284
        %v647 = vmul.f32 %v453, %v646
        %v648 = vstv %s348
        %v649 = vadd.f32 %v647, %v648
        %v650 = vmax.f32 %v649, 0.0
        %v651 = vstv %s412
        %v652 = vmul.f32 %v651, %v650
        %v653 = vadd.f32 %v645, %v652
        %v654 = vstv %s285
        %v655 = vmul.f32 %v453, %v654
        %v656 = vstv %s349
        %v657 = vadd.f32 %v655, %v656
        %v658 = vmax.f32 %v657, 0.0
        %v659 = vstv %s413
        %v660 = vmul.f32 %v659, %v658
        %v661 = vadd.f32 %v653, %v660
        %v662 = vstv %s286
        %v663 = vmul.f32 %v453, %v662
        %v664 = vstv %s350
        %v665 = vadd.f32 %v663, %v664
        %v666 = vmax.f32 %v665, 0.0
        %v667 = vstv %s414
        %v668 = vmul.f32 %v667, %v666
        %v669 = vadd.f32 %v661, %v668
        %v670 = vstv %s287
        %v671 = vmul.f32 %v453, %v670
        %v672 = vstv %s351
        %v673 = vadd.f32 %v671, %v672
        %v674 = vmax.f32 %v673, 0.0
        %v675 = vstv %s415
        %v676 = vmul.f32 %v675, %v674
        %v677 = vadd.f32 %v669, %v676
        %v678 = vstv %s288
        %v679 = vmul.f32 %v453, %v678
        %v680 = vstv %s352
        %v681 = vadd.f32 %v679, %v680
        %v682 = vmax.f32 %v681, 0.0
        %v683 = vstv %s416
        %v684 = vmul.f32 %v683, %v682
        %v685 = vadd.f32 %v677, %v684
        %v686 = vstv %s289
        %v687 = vmul.f32 %v453, %v686
        %v688 = vstv %s353
        %v689 = vadd.f32 %v687, %v688
        %v690 = vmax.f32 %v689, 0.0
        %v691 = vstv %s417
        %v692 = vmul.f32 %v691, %v690
        %v693 = vadd.f32 %v685, %v692
        %v694 = vstv %s290
        %v695 = vmul.f32 %v453, %v694
        %v696 = vstv %s354
        %v697 = vadd.f32 %v695, %v696
        %v698 = vmax.f32 %v697, 0.0
        %v699 = vstv %s418
        %v700 = vmul.f32 %v699, %v698
        %v701 = vadd.f32 %v693, %v700
        %v702 = vstv %s291
        %v703 = vmul.f32 %v453, %v702
        %v704 = vstv %s355
        %v705 = vadd.f32 %v703, %v704
        %v706 = vmax.f32 %v705, 0.0
        %v707 = vstv %s419
        %v708 = vmul.f32 %v707, %v706
        %v709 = vadd.f32 %v701, %v708
        %v710 = vstv %s292
        %v711 = vmul.f32 %v453, %v710
        %v712 = vstv %s356
        %v713 = vadd.f32 %v711, %v712
        %v714 = vmax.f32 %v713, 0.0
        %v715 = vstv %s420
        %v716 = vmul.f32 %v715, %v714
        %v717 = vadd.f32 %v709, %v716
        %v718 = vstv %s293
        %v719 = vmul.f32 %v453, %v718
        %v720 = vstv %s357
        %v721 = vadd.f32 %v719, %v720
        %v722 = vmax.f32 %v721, 0.0
        %v723 = vstv %s421
        %v724 = vmul.f32 %v723, %v722
        %v725 = vadd.f32 %v717, %v724
        %v726 = vstv %s294
        %v727 = vmul.f32 %v453, %v726
        %v728 = vstv %s358
        %v729 = vadd.f32 %v727, %v728
        %v730 = vmax.f32 %v729, 0.0
        %v731 = vstv %s422
        %v732 = vmul.f32 %v731, %v730
        %v733 = vadd.f32 %v725, %v732
        %v734 = vstv %s295
        %v735 = vmul.f32 %v453, %v734
        %v736 = vstv %s359
        %v737 = vadd.f32 %v735, %v736
        %v738 = vmax.f32 %v737, 0.0
        %v739 = vstv %s423
        %v740 = vmul.f32 %v739, %v738
        %v741 = vadd.f32 %v733, %v740
        %v742 = vstv %s296
        %v743 = vmul.f32 %v453, %v742
        %v744 = vstv %s360
        %v745 = vadd.f32 %v743, %v744
        %v746 = vmax.f32 %v745, 0.0
        %v747 = vstv %s424
        %v748 = vmul.f32 %v747, %v746
        %v749 = vadd.f32 %v741, %v748
        %v750 = vstv %s297
        %v751 = vmul.f32 %v453, %v750
        %v752 = vstv %s361
        %v753 = vadd.f32 %v751, %v752
        %v754 = vmax.f32 %v753, 0.0
        %v755 = vstv %s425
        %v756 = vmul.f32 %v755, %v754
        %v757 = vadd.f32 %v749, %v756
        %v758 = vstv %s298
        %v759 = vmul.f32 %v453, %v758
        %v760 = vstv %s362
        %v761 = vadd.f32 %v759, %v760
        %v762 = vmax.f32 %v761, 0.0
        %v763 = vstv %s426
        %v764 = vmul.f32 %v763, %v762
        %v765 = vadd.f32 %v757, %v764
        %v766 = vstv %s299
        %v767 = vmul.f32 %v453, %v766
        %v768 = vstv %s363
        %v769 = vadd.f32 %v767, %v768
        %v770 = vmax.f32 %v769, 0.0
        %v771 = vstv %s427
        %v772 = vmul.f32 %v771, %v770
        %v773 = vadd.f32 %v765, %v772
        %v774 = vstv %s300
        %v775 = vmul.f32 %v453, %v774
        %v776 = vstv %s364
        %v777 = vadd.f32 %v775, %v776
        %v778 = vmax.f32 %v777, 0.0
        %v779 = vstv %s428
        %v780 = vmul.f32 %v779, %v778
        %v781 = vadd.f32 %v773, %v780
        %v782 = vstv %s301
        %v783 = vmul.f32 %v453, %v782
        %v784 = vstv %s365
        %v785 = vadd.f32 %v783, %v784
        %v786 = vmax.f32 %v785, 0.0
        %v787 = vstv %s429
        %v788 = vmul.f32 %v787, %v786
        %v789 = vadd.f32 %v781, %v788
        %v790 = vstv %s302
        %v791 = vmul.f32 %v453, %v790
        %v792 = vstv %s366
        %v793 = vadd.f32 %v791, %v792
        %v794 = vmax.f32 %v793, 0.0
        %v795 = vstv %s430
        %v796 = vmul.f32 %v795, %v794
        %v797 = vadd.f32 %v789, %v796
        %v798 = vstv %s303
        %v799 = vmul.f32 %v453, %v798
        %v800 = vstv %s367
        %v801 = vadd.f32 %v799, %v800
        %v802 = vmax.f32 %v801, 0.0
        %v803 = vstv %s431
        %v804 = vmul.f32 %v803, %v802
        %v805 = vadd.f32 %v797, %v804
        %v806 = vstv %s304
        %v807 = vmul.f32 %v453, %v806
        %v808 = vstv %s368
        %v809 = vadd.f32 %v807, %v808
        %v810 = vmax.f32 %v809, 0.0
        %v811 = vstv %s432
        %v812 = vmul.f32 %v811, %v810
        %v813 = vadd.f32 %v805, %v812
        %v814 = vstv %s305
        %v815 = vmul.f32 %v453, %v814
        %v816 = vstv %s369
        %v817 = vadd.f32 %v815, %v816
        %v818 = vmax.f32 %v817, 0.0
        %v819 = vstv %s433
        %v820 = vmul.f32 %v819, %v818
        %v821 = vadd.f32 %v813, %v820
        %v822 = vstv %s306
        %v823 = vmul.f32 %v453, %v822
        %v824 = vstv %s370
        %v825 = vadd.f32 %v823, %v824
        %v826 = vmax.f32 %v825, 0.0
        %v827 = vstv %s434
        %v828 = vmul.f32 %v827, %v826
        %v829 = vadd.f32 %v821, %v828
        %v830 = vstv %s307
        %v831 = vmul.f32 %v453, %v830
        %v832 = vstv %s371
        %v833 = vadd.f32 %v831, %v832
        %v834 = vmax.f32 %v833, 0.0
        %v835 = vstv %s435
        %v836 = vmul.f32 %v835, %v834
        %v837 = vadd.f32 %v829, %v836
        %v838 = vstv %s308
        %v839 = vmul.f32 %v453, %v838
        %v840 = vstv %s372
        %v841 = vadd.f32 %v839, %v840
        %v842 = vmax.f32 %v841, 0.0
        %v843 = vstv %s436
        %v844 = vmul.f32 %v843, %v842
        %v845 = vadd.f32 %v837, %v844
        %v846 = vstv %s309
        %v847 = vmul.f32 %v453, %v846
        %v848 = vstv %s373
        %v849 = vadd.f32 %v847, %v848
        %v850 = vmax.f32 %v849, 0.0
        %v851 = vstv %s437
        %v852 = vmul.f32 %v851, %v850
        %v853 = vadd.f32 %v845, %v852
        %v854 = vstv %s310
        %v855 = vmul.f32 %v453, %v854
        %v856 = vstv %s374
        %v857 = vadd.f32 %v855, %v856
        %v858 = vmax.f32 %v857, 0.0
        %v859 = vstv %s438
        %v860 = vmul.f32 %v859, %v858
        %v861 = vadd.f32 %v853, %v860
        %v862 = vstv %s311
        %v863 = vmul.f32 %v453, %v862
        %v864 = vstv %s375
        %v865 = vadd.f32 %v863, %v864
        %v866 = vmax.f32 %v865, 0.0
        %v867 = vstv %s439
        %v868 = vmul.f32 %v867, %v866
        %v869 = vadd.f32 %v861, %v868
        %v870 = vstv %s312
        %v871 = vmul.f32 %v453, %v870
        %v872 = vstv %s376
        %v873 = vadd.f32 %v871, %v872
        %v874 = vmax.f32 %v873, 0.0
        %v875 = vstv %s440
        %v876 = vmul.f32 %v875, %v874
        %v877 = vadd.f32 %v869, %v876
        %v878 = vstv %s313
        %v879 = vmul.f32 %v453, %v878
        %v880 = vstv %s377
        %v881 = vadd.f32 %v879, %v880
        %v882 = vmax.f32 %v881, 0.0
        %v883 = vstv %s441
        %v884 = vmul.f32 %v883, %v882
        %v885 = vadd.f32 %v877, %v884
        %v886 = vstv %s314
        %v887 = vmul.f32 %v453, %v886
        %v888 = vstv %s378
        %v889 = vadd.f32 %v887, %v888
        %v890 = vmax.f32 %v889, 0.0
        %v891 = vstv %s442
        %v892 = vmul.f32 %v891, %v890
        %v893 = vadd.f32 %v885, %v892
        %v894 = vstv %s315
        %v895 = vmul.f32 %v453, %v894
        %v896 = vstv %s379
        %v897 = vadd.f32 %v895, %v896
        %v898 = vmax.f32 %v897, 0.0
        %v899 = vstv %s443
        %v900 = vmul.f32 %v899, %v898
        %v901 = vadd.f32 %v893, %v900
        %v902 = vstv %s316
        %v903 = vmul.f32 %v453, %v902
        %v904 = vstv %s380
        %v905 = vadd.f32 %v903, %v904
        %v906 = vmax.f32 %v905, 0.0
        %v907 = vstv %s444
        %v908 = vmul.f32 %v907, %v906
        %v909 = vadd.f32 %v901, %v908
        %v910 = vstv %s317
        %v911 = vmul.f32 %v453, %v910
        %v912 = vstv %s381
        %v913 = vadd.f32 %v911, %v912
        %v914 = vmax.f32 %v913, 0.0
        %v915 = vstv %s445
        %v916 = vmul.f32 %v915, %v914
        %v917 = vadd.f32 %v909, %v916
        %v918 = vstv %s318
        %v919 = vmul.f32 %v453, %v918
        %v920 = vstv %s382
        %v921 = vadd.f32 %v919, %v920
        %v922 = vmax.f32 %v921, 0.0
        %v923 = vstv %s446
        %v924 = vmul.f32 %v923, %v922
        %v925 = vadd.f32 %v917, %v924
        %v926 = vstv %s319
        %v927 = vmul.f32 %v453, %v926
        %v928 = vstv %s383
        %v929 = vadd.f32 %v927, %v928
        %v930 = vmax.f32 %v929, 0.0
        %v931 = vstv %s447
        %v932 = vmul.f32 %v931, %v930
        %v933 = vadd.f32 %v925, %v932
        %v934 = vstv %s320
        %v935 = vmul.f32 %v453, %v934
        %v936 = vstv %s384
        %v937 = vadd.f32 %v935, %v936
        %v938 = vmax.f32 %v937, 0.0
        %v939 = vstv %s448
        %v940 = vmul.f32 %v939, %v938
        %v941 = vadd.f32 %v933, %v940
        %v942 = vstv %s321
        %v943 = vmul.f32 %v453, %v942
        %v944 = vstv %s385
        %v945 = vadd.f32 %v943, %v944
        %v946 = vmax.f32 %v945, 0.0
        %v947 = vstv %s449
        %v948 = vmul.f32 %v947, %v946
        %v949 = vadd.f32 %v941, %v948
        %v950 = vstv %s322
        %v951 = vmul.f32 %v453, %v950
        %v952 = vstv %s386
        %v953 = vadd.f32 %v951, %v952
        %v954 = vmax.f32 %v953, 0.0
        %v955 = vstv %s450
        %v956 = vmul.f32 %v955, %v954
        %v957 = vadd.f32 %v949, %v956
        %v958 = vstv %s323
        %v959 = vmul.f32 %v453, %v958
        %v960 = vstv %s387
        %v961 = vadd.f32 %v959, %v960
        %v962 = vmax.f32 %v961, 0.0
        %v963 = vstv %s451
        %v964 = vmul.f32 %v963, %v962
        %v965 = vadd.f32 %v957, %v964
        %v966 = vstv %s452
        %v967 = vadd.f32 %v965, %v966
        %968 = vst [vmem:[%s259] sm:$0xff] %v967
        %p969 = scmp.lt.s32.totalorder %s19, 1
        %s970 = scalar_select %p969, %s19, 1
        %s971 = smul.addr %s970, 8
        %s972 = scalar_lea.vmem %s5, %s971
        // Predicated region
        $region53: #{fitting_gelu.1} parent=39 // pred_check
          %p973 = pneg %p147
        $region54: #{fitting_gelu.1} parent=39 // pred_check_branch
          %975 = sbr.rel (%p973) target = $region56
        $region55: #{fitting_gelu.1} parent=39 // pred_region
          _
        $region56: #{fitting_gelu.1} parent=39 // pred_fallthru
          _
      $region40: #{fitting_gelu.1} parent=5 // pred_fallthru
        _
      %p976 = scmp.le.s32.totalorder 2, %s14
      // Predicated region
      $region57: #{fitting_gelu.1} parent=5 // pred_check
        %p977 = pneg %p976
      $region58: #{fitting_gelu.1} parent=5 // pred_check_branch
        %979 = sbr.rel (%p977) target = $region60
      $region59: #{fitting_gelu.1} parent=5 // pred_region
        %s980 = ssub.s32 %s14, 2
        // Predicated region
        $region61: #{fitting_gelu.1} parent=59 // pred_check
          %p981 = pneg %p153
        $region62: #{fitting_gelu.1} parent=59 // pred_check_branch
          %983 = sbr.rel (%p981) target = $region64
        $region63: #{fitting_gelu.1} parent=59 // pred_region
          %p984 = scmp.lt.s32.totalorder %s20, 1
          %s985 = scalar_select %p984, %s20, 1
          %s986 = smul.addr %s985, 8
          %s987 = scalar_lea.vmem %s5, %s986
        $region64: #{fitting_gelu.1} parent=59 // pred_fallthru
          _
      $region60: #{fitting_gelu.1} parent=5 // pred_fallthru
        _
    $region6: #{fitting_gelu.1} parent=1 // loop_footer
      %s18 = sadd.s32 1, %s14
    $region7: #{fitting_gelu.1} parent=1 // loop_footer_branch
      %13 = sbr.rel target = $region3
    $region8: #{fitting_gelu.1} parent=1 // loop_exit
      _
    %988 = vsyncpa [#allocation4], 1
    %s989 = scalar_lea.sflag [#allocation4], 1
    %990 = vsyncpa %s989, 1
    %991 = vsyncpa [#allocation6], 1

</llo_original>
